<compile_context>
chip_gen: v7x
topology: tpu7x:2x2x1
jax: 0.10.0
libtpu: 0.0.40
codegen_flags: <defaults>
</compile_context>

<pallas_src>
import functools

import jax
import jax.numpy as jnp
from jax.experimental import pallas as pl
from jax.experimental.pallas import tpu as pltpu

# ----- small synthetic shapes (real model: H=768, layers=[768,768]) -----
B, S, L = 16, 8, 16     # batch, num_subsequence, max_len
H = 128                 # hidden size (lane-aligned)
E = 4                   # config.num_experts
T = 8                   # num_traits for task='mbti'
VOCAB = 64
TEMP_CL = 0.1           # config.temp_cl
TRADE_OFF = 0.1         # config.trade_off_param

GATE_PAD = 128          # gate-logit slab padded to one lane tile
LANE = 128              # padded fc-output width (lane-dense store)
LOSS_COL = LANE - 1     # tail lane (row 0) that carries the scalar UCR loss


# --------------------------------------------------------------------------------------
# Main kernel: per row-tile MoE gating + experts + AveragePooler reduction
# --------------------------------------------------------------------------------------
def _moe_pool_kernel(x_ref, wpool_ref, wbig_ref, cpad_ref, pooled_ref, *, tb, subseq):
    rows = tb * subseq
    x = x_ref[...]                                              # (rows, H) bf16

    # One lane-dense bf16 MXU call: [gate logits (padded to 128) | x @ W_e^T, e=0..E-1].
    # NOTE(v5e): the 128 padded gate columns could be moved to the VPU/XLU (broadcast-mul
    # + lane reduce) to shave MXU FLOPs on the 4x128^2 MXU; not worth it on v6e/v7x.
    big = jnp.dot(x, wbig_ref[...], preferred_element_type=jnp.float32)

    # --- noisy_top_k_gating (eval -> clean logits): softmax over the first E lanes ---
    gate_slab = big[:, :GATE_PAD]                               # (rows, 128)
    lane_g = jax.lax.broadcasted_iota(jnp.int32, gate_slab.shape, 1)
    gvalid = lane_g < E
    gl = jnp.where(gvalid, gate_slab, -1e30)
    gmax = jnp.max(gl, axis=-1, keepdims=True)
    gexp = jnp.where(gvalid, jnp.exp(gl - gmax), 0.0)
    # softmax denominator on the (otherwise idle) EUP; error << bf16-MXU tolerance
    gates = gexp * pl.reciprocal(jnp.sum(gexp, axis=-1, keepdims=True), approx=True)

    # --- AveragePooler weights folded into the gates (one (rows,128) VPU pass) ---
    gs = gates * wpool_ref[...]                                 # (rows, 128); lanes >= E are 0

    # --- experts: (x - b_e) @ W_e^T = x @ W_e^T - c_e ---------------------------------
    # gate-weighted combine on the VPU; the c_e subtraction is ONE tiny MXU dot
    # (gs @ c_pad), keeping the VPU off the critical path.
    acc = jnp.zeros((rows, H), jnp.float32)
    for e in range(E):                                          # E is small & static
        slab = big[:, GATE_PAD + e * H:GATE_PAD + (e + 1) * H]
        acc = acc + gs[:, e:e + 1] * slab
    acc = acc - jnp.dot(gs, cpad_ref[...], preferred_element_type=jnp.float32)

    # --- AveragePooler: masked sum over subsequences (1/denom already in gs) ----------
    # subseq stays a multiple of 8 sublanes so this reshape never crosses (8,128) tiles;
    # if S ever stops being a multiple of 8, switch to an explicit fori accumulation.
    pooled_ref[...] = jnp.sum(acc.reshape(tb, subseq, H), axis=1)       # (tb, H) f32


# --------------------------------------------------------------------------------------
# Epilogue kernel: fc head + full-batch UCR contrastive loss (needs ALL pooled rows,
# hence a separate one-shot call rather than per-row-tile work).
# --------------------------------------------------------------------------------------
def _head_loss_kernel(pooled_ref, wfc_ref, bfc_ref, out_ref, *, batch):
    pooled = pooled_ref[...]                                    # (B, H) f32

    # fc head: single bf16 MXU pass, f32 accumulation + f32 bias, lane-padded to 128.
    logits = jnp.dot(pooled.astype(jnp.bfloat16), wfc_ref[...],
                     preferred_element_type=jnp.float32) + bfc_ref[...]  # (B, 128)

    # --- UCR contrastive loss (eval: dropout is identity) ---
    dn = (((1,), (1,)), ((), ()))                               # contract last dims
    sim_num = jax.lax.dot_general(pooled, pooled, dn,
                                  preferred_element_type=jnp.float32)    # (B, B)
    nrm = jnp.sqrt(jnp.sum(pooled * pooled, axis=-1, keepdims=True))     # (B, 1)
    nrm_outer = jax.lax.dot_general(nrm, nrm, dn,
                                    preferred_element_type=jnp.float32)
    # exact divides here on purpose: the 1e-8 guards are sensitive to approx reciprocals
    sim = sim_num / jnp.maximum(nrm_outer, 1e-8)
    es = jnp.exp(sim / TEMP_CL)
    row_b = jax.lax.broadcasted_iota(jnp.int32, es.shape, 0)
    col_b = jax.lax.broadcasted_iota(jnp.int32, es.shape, 1)
    diag = jnp.sum(jnp.where(row_b == col_b, es, 0.0), axis=1, keepdims=True)
    rowsum = jnp.sum(es, axis=1, keepdims=True)
    per = -jnp.log(diag / rowsum)                               # (B, 1)
    loss = jnp.sum(per, axis=0, keepdims=True) * (TRADE_OFF / batch)     # (1, 1)

    # Scalar loss folded into an unused tail lane of the lane-dense output slab
    # (single unmasked store, no separate (1,1) output DMA). Safe while T << LANE.
    row_o = jax.lax.broadcasted_iota(jnp.int32, logits.shape, 0)
    lane_o = jax.lax.broadcasted_iota(jnp.int32, logits.shape, 1)
    out_ref[...] = jnp.where((row_o == 0) & (lane_o == LOSS_COL),
                             jnp.broadcast_to(loss, logits.shape), logits)


# --------------------------------------------------------------------------------------
# Params / stand-in encoder / wrapper
# --------------------------------------------------------------------------------------
def init_params(key):
    ks = jax.random.split(key, 6)
    return dict(
        emb_table=jax.random.normal(ks[0], (VOCAB, H), jnp.float32) * 0.02,
        w_gate=jax.random.normal(ks[1], (H, E), jnp.float32) * 0.02,
        expert_bias=jax.random.normal(ks[2], (E, H), jnp.float32) * 0.02,
        expert_w=jax.random.normal(ks[3], (E, H, H), jnp.float32) * 0.02,  # torch (out, in)
        fc_w=jax.random.normal(ks[4], (T, H), jnp.float32) * 0.02,          # torch (out, in)
        fc_b=jax.random.normal(ks[5], (T,), jnp.float32) * 0.02,
    )


def _encode_cls(post_tokens_ids, params):
    # TODO(synk): BertModel.from_pretrained(...) has no Pallas equivalent (pretrained
    # checkpoint); deterministic stand-in = masked mean of token embeddings as the CLS.
    attn = (post_tokens_ids != 0).astype(jnp.float32)                   # (B, S, L)
    emb = params["emb_table"][post_tokens_ids]                          # (B, S, L, H)
    cls = (emb * attn[..., None]).sum(2) / (attn.sum(-1, keepdims=True) + 1e-8)
    return cls, attn                                                    # (B, S, H)


@functools.partial(jax.jit, static_argnames=("tile_batches",))
def moe_forward(post_tokens_ids, params, tile_batches=8):
    b, s, _ = post_tokens_ids.shape
    # Row tile = whole batches (so pooling stays inside one tile) and a multiple of 8
    # sublanes. Real scale: aim for >=256 rows on v6e/v7x, 128 on v5e; on v7x (64 MiB
    # VMEM) single-buffer the constant-index weight (pipeline_mode=pl.Buffered(1)) or
    # halve the row tile relative to v6e.
    assert b % tile_batches == 0
    assert s % 8 == 0 and (tile_batches * s) % 8 == 0
    assert tile_batches % 8 == 0 or tile_batches == b   # pooled block (8,128) alignment

    cls, attn = _encode_cls(post_tokens_ids, params)
    post_mask = (attn.sum(-1) > 0).astype(jnp.float32)                  # (B, S)

    n = b * s
    # bf16 activations at the kernel boundary; accumulation stays f32 inside.
    x = cls.reshape(n, H).astype(jnp.bfloat16)

    # AveragePooler denominator (mask + 1e-8).sum folded into per-row pooling weights.
    denom = post_mask.sum(1, keepdims=True) + s * 1e-8                  # (B, 1)
    w_pool = (post_mask / denom).reshape(n, 1)                          # (N, 1)

    # Fused [gate | expert] weight, lane aligned: (H, 128 + E*H), bf16.
    w_gate_pad = jnp.zeros((H, GATE_PAD), jnp.float32).at[:, :E].set(params["w_gate"])
    w_exp = jnp.transpose(params["expert_w"], (2, 0, 1)).reshape(H, E * H)  # W_e^T slabs
    w_big = jnp.concatenate([w_gate_pad, w_exp], axis=1).astype(jnp.bfloat16)

    # Constant expert rows c_e = b_e @ W_e^T (tiny one-time op, accurate f32),
    # zero-padded to 128 rows so the in-kernel correction dot is lane-aligned.
    c = jnp.einsum("ei,eoi->eo", params["expert_bias"], params["expert_w"],
                   precision=jax.lax.Precision.HIGHEST)                 # (E, H)
    c_pad = jnp.zeros((GATE_PAD, H), jnp.float32).at[:E, :].set(c)

    # Lane-padded fc head (bf16 weight, f32 bias; real logits live in [:, :T]).
    wfc = (jnp.zeros((H, LANE), jnp.float32).at[:, :T].set(params["fc_w"].T)
           .astype(jnp.bfloat16))
    bfc = jnp.zeros((1, LANE), jnp.float32).at[0, :T].set(params["fc_b"])

    rows_tile = tile_batches * s
    grid = (b // tile_batches,)

    pooled = pl.pallas_call(
        functools.partial(_moe_pool_kernel, tb=tile_batches, subseq=s),
        out_shape=jax.ShapeDtypeStruct((b, H), jnp.float32),
        grid=grid,
        in_specs=[
            pl.BlockSpec((rows_tile, H), lambda i: (i, 0)),             # x tile
            pl.BlockSpec((rows_tile, 1), lambda i: (i, 0)),             # pooling weights
            pl.BlockSpec((H, GATE_PAD + E * H), lambda i: (0, 0)),      # fused weight (resident)
            pl.BlockSpec((GATE_PAD, H), lambda i: (0, 0)),              # c_e rows (resident)
        ],
        out_specs=pl.BlockSpec((tile_batches, H), lambda i: (i, 0)),
        compiler_params=pltpu.CompilerParams(
            dimension_semantics=("parallel",),          # row tiles are independent
            vmem_limit_bytes=32 * 1024 * 1024),         # explicit (v5e default is 16 MiB)
    )(x, w_pool, w_big, c_pad)

    # Epilogue: needs the FULL pooled batch for the (B,B) similarity matrix.
    vmem = pl.BlockSpec(memory_space=pltpu.MemorySpace.VMEM)
    out_pad = pl.pallas_call(
        functools.partial(_head_loss_kernel, batch=b),
        out_shape=jax.ShapeDtypeStruct((b, LANE), jnp.float32),
        in_specs=[vmem, vmem, vmem],
        out_specs=vmem,
    )(pooled, wfc, bfc)

    logits = out_pad[:, :T]
    loss = out_pad[0, LOSS_COL]
    logits_pairs = logits.reshape(b, T // 2, 2).transpose(1, 0, 2)      # (T/2, B, 2)
    return {"logits_list": [logits_pairs[i] for i in range(T // 2)],
            "loss_cl": loss}


def reference_forward(post_tokens_ids, params):
    """Pure-JAX reference mirroring the PyTorch forward (eval mode)."""
    cls, attn = _encode_cls(post_tokens_ids, params)
    post_mask = (attn.sum(-1) > 0).astype(jnp.float32)
    x = cls                                                             # (B, S, H)
    gates = jax.nn.softmax(x @ params["w_gate"], axis=-1)               # (B, S, E)
    exp_out = jnp.stack(
        [(x - params["expert_bias"][e]) @ params["expert_w"][e].T for e in range(E)],
        axis=-2)                                                        # (B, S, E, H)
    out = (gates[..., None] * exp_out).sum(-2)                          # (B, S, H)
    # AveragePooler (the original module spec)
    mask = jnp.broadcast_to(post_mask[..., None], out.shape)
    pooled = (out * mask).sum(1) / (mask + 1e-8).sum(1)                 # (B, H)
    logits = pooled @ params["fc_w"].T + params["fc_b"]                 # (B, T)
    nrm = jnp.linalg.norm(pooled, axis=-1, keepdims=True)
    sim = (pooled @ pooled.T) / jnp.maximum(nrm * nrm.T, 1e-8)
    es = jnp.exp(sim / TEMP_CL)
    loss = jnp.mean(-jnp.log(jnp.diag(es) / es.sum(1))) * TRADE_OFF
    b = pooled.shape[0]
    logits_pairs = logits.reshape(b, T // 2, 2).transpose(1, 0, 2)
    return {"logits_list": [logits_pairs[i] for i in range(T // 2)], "loss_cl": loss}


if __name__ == "__main__":
    key = jax.random.PRNGKey(0)
    kp, kid, klen = jax.random.split(key, 3)
    params = init_params(kp)

    # deterministic token ids with some padded tails / fully padded subsequences
    ids = jax.random.randint(kid, (B, S, L), 1, VOCAB, dtype=jnp.int32)
    lengths = jax.random.randint(klen, (B, S), 0, L + 1)
    lengths = lengths.at[:, 0].set(L)  # at least one fully valid subsequence per batch
    pos = jnp.arange(L)
    post_tokens_ids = jnp.where(pos[None, None, :] < lengths[..., None], ids, 0)

    out = jax.block_until_ready(moe_forward(post_tokens_ids, params))
    ref = reference_forward(post_tokens_ids, params)

    # bf16 MXU inputs + the (x-b)W = xW - bW refactor => looser tolerances than an
    # f32-emulation kernel; exp(sim/0.1) amplifies pooled error, hence the loss rtol.
    for got, want in zip(out["logits_list"], ref["logits_list"]):
        assert got.shape == (B, 2)
        assert jnp.allclose(got, want, rtol=2e-2, atol=2e-3)
    assert jnp.allclose(out["loss_cl"], ref["loss_cl"], rtol=1e-1, atol=5e-3)

    print("KERNEL_OK")
</pallas_src>

<mosaic_0001>
module attributes {stable_mosaic.version = 11 : i64} {
  func.func @_moe_pool_kernel(%arg0: i32, %arg1: memref<64x128xbf16, #tpu.memory_space<vmem>>, %arg2: memref<64x1xf32, #tpu.memory_space<vmem>>, %arg3: memref<128x640xbf16, #tpu.memory_space<vmem>>, %arg4: memref<128x128xf32, #tpu.memory_space<vmem>>, %arg5: memref<8x128xf32, #tpu.memory_space<vmem>>) attributes {dimension_semantics = [#tpu.dimension_semantics<parallel>], iteration_bounds = array<i64: 2>, scalar_prefetch = 0 : i64, scratch_operands = 0 : i64, tpu.core_type = #tpu.core_type<tc>, window_params = [{transform_indices = @transform_0, window_bounds = array<i64: 64, 128>}, {transform_indices = @transform_1, window_bounds = array<i64: 64, 1>}, {pipeline_mode = #tpu.pipeline_mode<synchronous>, transform_indices = @transform_2, window_bounds = array<i64: 128, 640>}, {pipeline_mode = #tpu.pipeline_mode<synchronous>, transform_indices = @transform_3, window_bounds = array<i64: 128, 128>}, {transform_indices = @transform_4, window_bounds = array<i64: 8, 128>}]} {
    %c0 = arith.constant 0 : index
    %c0_0 = arith.constant 0 : index
    %0 = vector.load %arg1[%c0, %c0_0] : memref<64x128xbf16, #tpu.memory_space<vmem>>, vector<64x128xbf16>
    %c0_1 = arith.constant 0 : index
    %c0_2 = arith.constant 0 : index
    %1 = vector.load %arg3[%c0_1, %c0_2] : memref<128x640xbf16, #tpu.memory_space<vmem>>, vector<128x640xbf16>
    %cst = arith.constant dense<0.000000e+00> : vector<64x640xf32>
    %2 = tpu.matmul %0, %1, %cst {dimension_numbers = #tpu.dot_dimension_numbers<[1], [0], [0], [1], [0, 0, 1, 1], [], []>} : vector<64x128xbf16>, vector<128x640xbf16>, vector<64x640xf32> -> vector<64x640xf32>
    %3 = vector.extract_strided_slice %2 {offsets = [0, 0], sizes = [64, 128], strides = [1, 1]} : vector<64x640xf32> to vector<64x128xf32>
    %4 = tpu.iota {dimensions = array<i32: 1>} : vector<64x128xi32>
    %c4_i32 = arith.constant 4 : i32
    %5 = vector.broadcast %c4_i32 : i32 to vector<64x128xi32>
    %6 = arith.cmpi slt, %4, %5 : vector<64x128xi32>
    %cst_3 = arith.constant -1.000000e+30 : f32
    %7 = vector.broadcast %cst_3 : f32 to vector<64x128xf32>
    %8 = arith.select %6, %3, %7 : vector<64x128xi1>, vector<64x128xf32>
    %cst_4 = arith.constant dense<0xFF800000> : vector<64xf32>
    %9 = vector.multi_reduction <maximumf>, %8, %cst_4 [1] : vector<64x128xf32> to vector<64xf32>
    %10 = vector.shape_cast %9 : vector<64xf32> to vector<64x1xf32>
    %11 = vector.broadcast %10 : vector<64x1xf32> to vector<64x128xf32>
    %12 = arith.subf %8, %11 : vector<64x128xf32>
    %13 = math.exp %12 : vector<64x128xf32>
    %cst_5 = arith.constant 0.000000e+00 : f32
    %14 = vector.broadcast %cst_5 : f32 to vector<64x128xf32>
    %15 = arith.select %6, %13, %14 : vector<64x128xi1>, vector<64x128xf32>
    %cst_6 = arith.constant dense<0.000000e+00> : vector<64xf32>
    %16 = vector.multi_reduction <add>, %15, %cst_6 [1] : vector<64x128xf32> to vector<64xf32>
    %17 = vector.shape_cast %16 : vector<64xf32> to vector<64x1xf32>
    %18 = tpu.reciprocal %17 {approx = true} : vector<64x1xf32> -> vector<64x1xf32>
    %19 = vector.broadcast %18 : vector<64x1xf32> to vector<64x128xf32>
    %20 = arith.mulf %15, %19 : vector<64x128xf32>
    %c0_7 = arith.constant 0 : index
    %c0_8 = arith.constant 0 : index
    %21 = vector.load %arg2[%c0_7, %c0_8] : memref<64x1xf32, #tpu.memory_space<vmem>>, vector<64x1xf32>
    %22 = vector.broadcast %21 : vector<64x1xf32> to vector<64x128xf32>
    %23 = arith.mulf %20, %22 : vector<64x128xf32>
    %cst_9 = arith.constant 0.000000e+00 : f32
    %24 = vector.broadcast %cst_9 : f32 to vector<64x128xf32>
    %25 = vector.extract_strided_slice %2 {offsets = [0, 128], sizes = [64, 128], strides = [1, 1]} : vector<64x640xf32> to vector<64x128xf32>
    %26 = vector.extract_strided_slice %23 {offsets = [0, 0], sizes = [64, 1], strides = [1, 1]} : vector<64x128xf32> to vector<64x1xf32>
    %27 = vector.broadcast %26 : vector<64x1xf32> to vector<64x128xf32>
    %28 = arith.mulf %27, %25 : vector<64x128xf32>
    %29 = arith.addf %24, %28 : vector<64x128xf32>
    %30 = vector.extract_strided_slice %2 {offsets = [0, 256], sizes = [64, 128], strides = [1, 1]} : vector<64x640xf32> to vector<64x128xf32>
    %31 = vector.extract_strided_slice %23 {offsets = [0, 1], sizes = [64, 1], strides = [1, 1]} : vector<64x128xf32> to vector<64x1xf32>
    %32 = vector.broadcast %31 : vector<64x1xf32> to vector<64x128xf32>
    %33 = arith.mulf %32, %30 : vector<64x128xf32>
    %34 = arith.addf %29, %33 : vector<64x128xf32>
    %35 = vector.extract_strided_slice %2 {offsets = [0, 384], sizes = [64, 128], strides = [1, 1]} : vector<64x640xf32> to vector<64x128xf32>
    %36 = vector.extract_strided_slice %23 {offsets = [0, 2], sizes = [64, 1], strides = [1, 1]} : vector<64x128xf32> to vector<64x1xf32>
    %37 = vector.broadcast %36 : vector<64x1xf32> to vector<64x128xf32>
    %38 = arith.mulf %37, %35 : vector<64x128xf32>
    %39 = arith.addf %34, %38 : vector<64x128xf32>
    %40 = vector.extract_strided_slice %2 {offsets = [0, 512], sizes = [64, 128], strides = [1, 1]} : vector<64x640xf32> to vector<64x128xf32>
    %41 = vector.extract_strided_slice %23 {offsets = [0, 3], sizes = [64, 1], strides = [1, 1]} : vector<64x128xf32> to vector<64x1xf32>
    %42 = vector.broadcast %41 : vector<64x1xf32> to vector<64x128xf32>
    %43 = arith.mulf %42, %40 : vector<64x128xf32>
    %44 = arith.addf %39, %43 : vector<64x128xf32>
    %c0_10 = arith.constant 0 : index
    %c0_11 = arith.constant 0 : index
    %45 = vector.load %arg4[%c0_10, %c0_11] : memref<128x128xf32, #tpu.memory_space<vmem>>, vector<128x128xf32>
    %cst_12 = arith.constant dense<0.000000e+00> : vector<64x128xf32>
    %46 = tpu.matmul %23, %45, %cst_12 {dimension_numbers = #tpu.dot_dimension_numbers<[1], [0], [0], [1], [0, 0, 1, 1], [], []>} : vector<64x128xf32>, vector<128x128xf32>, vector<64x128xf32> -> vector<64x128xf32>
    %47 = arith.subf %44, %46 : vector<64x128xf32>
    %48 = vector.shape_cast %47 : vector<64x128xf32> to vector<8x8x128xf32>
    %cst_13 = arith.constant dense<0.000000e+00> : vector<8x128xf32>
    %49 = vector.multi_reduction <add>, %48, %cst_13 [1] : vector<8x8x128xf32> to vector<8x128xf32>
    %c0_14 = arith.constant 0 : index
    %c0_15 = arith.constant 0 : index
    %50 = vector.load %arg5[%c0_14, %c0_15] : memref<8x128xf32, #tpu.memory_space<vmem>>, vector<8x128xf32>
    tpu.vector_store %arg5[%c0_14, %c0_15], %49 {strides = array<i32>} : memref<8x128xf32, #tpu.memory_space<vmem>>, vector<8x128xf32>,
    return
  }
  func.func @transform_0(%arg0: i32) -> (i32, i32) {
    %c0_i32 = arith.constant 0 : i32
    %c0_i32_0 = arith.constant 0 : i32
    return %arg0, %c0_i32 : i32, i32
  }
  func.func @transform_1(%arg0: i32) -> (i32, i32) {
    %c0_i32 = arith.constant 0 : i32
    %c0_i32_0 = arith.constant 0 : i32
    return %arg0, %c0_i32 : i32, i32
  }
  func.func @transform_2(%arg0: i32) -> (i32, i32) {
    %c0_i32 = arith.constant 0 : i32
    %c0_i32_0 = arith.constant 0 : i32
    %c0_i32_1 = arith.constant 0 : i32
    return %c0_i32, %c0_i32_0 : i32, i32
  }
  func.func @transform_3(%arg0: i32) -> (i32, i32) {
    %c0_i32 = arith.constant 0 : i32
    %c0_i32_0 = arith.constant 0 : i32
    %c0_i32_1 = arith.constant 0 : i32
    return %c0_i32, %c0_i32_0 : i32, i32
  }
  func.func @transform_4(%arg0: i32) -> (i32, i32) {
    %c0_i32 = arith.constant 0 : i32
    %c0_i32_0 = arith.constant 0 : i32
    return %arg0, %c0_i32 : i32, i32
  }
}

module attributes {stable_mosaic.version = 11 : i64} {
  func.func @_head_loss_kernel(%arg0: memref<16x128xf32, #tpu.memory_space<vmem>>, %arg1: memref<128x128xbf16, #tpu.memory_space<vmem>>, %arg2: memref<1x128xf32, #tpu.memory_space<vmem>>, %arg3: memref<16x128xf32, #tpu.memory_space<vmem>>) attributes {dimension_semantics = [], scalar_prefetch = 0 : i64, scratch_operands = 0 : i64, tpu.core_type = #tpu.core_type<tc>} {
    %c0 = arith.constant 0 : index
    %c0_0 = arith.constant 0 : index
    %0 = vector.load %arg0[%c0, %c0_0] : memref<16x128xf32, #tpu.memory_space<vmem>>, vector<16x128xf32>
    %1 = arith.truncf %0 : vector<16x128xf32> to vector<16x128xbf16>
    %c0_1 = arith.constant 0 : index
    %c0_2 = arith.constant 0 : index
    %2 = vector.load %arg1[%c0_1, %c0_2] : memref<128x128xbf16, #tpu.memory_space<vmem>>, vector<128x128xbf16>
    %cst = arith.constant dense<0.000000e+00> : vector<16x128xf32>
    %3 = tpu.matmul %1, %2, %cst {dimension_numbers = #tpu.dot_dimension_numbers<[1], [0], [0], [1], [0, 0, 1, 1], [], []>} : vector<16x128xbf16>, vector<128x128xbf16>, vector<16x128xf32> -> vector<16x128xf32>
    %c0_3 = arith.constant 0 : index
    %c0_4 = arith.constant 0 : index
    %4 = vector.load %arg2[%c0_3, %c0_4] : memref<1x128xf32, #tpu.memory_space<vmem>>, vector<1x128xf32>
    %5 = vector.broadcast %4 : vector<1x128xf32> to vector<16x128xf32>
    %6 = arith.addf %3, %5 : vector<16x128xf32>
    %cst_5 = arith.constant dense<0.000000e+00> : vector<16x16xf32>
    %7 = tpu.matmul %0, %0, %cst_5 {dimension_numbers = #tpu.dot_dimension_numbers<[1], [1], [0], [0], [0, 0, 1, 0], [], []>} : vector<16x128xf32>, vector<16x128xf32>, vector<16x16xf32> -> vector<16x16xf32>
    %8 = arith.mulf %0, %0 : vector<16x128xf32>
    %cst_6 = arith.constant dense<0.000000e+00> : vector<16xf32>
    %9 = vector.multi_reduction <add>, %8, %cst_6 [1] : vector<16x128xf32> to vector<16xf32>
    %10 = vector.shape_cast %9 : vector<16xf32> to vector<16x1xf32>
    %11 = math.sqrt %10 : vector<16x1xf32>
    %cst_7 = arith.constant dense<0.000000e+00> : vector<16x16xf32>
    %12 = tpu.matmul %11, %11, %cst_7 {dimension_numbers = #tpu.dot_dimension_numbers<[1], [1], [0], [0], [0, 0, 1, 0], [], []>} : vector<16x1xf32>, vector<16x1xf32>, vector<16x16xf32> -> vector<16x16xf32>
    %cst_8 = arith.constant 9.99999993E-9 : f32
    %13 = vector.broadcast %cst_8 : f32 to vector<16x16xf32>
    %14 = arith.maximumf %12, %13 : vector<16x16xf32>
    %15 = arith.divf %7, %14 : vector<16x16xf32>
    %cst_9 = arith.constant 1.000000e-01 : f32
    %16 = vector.broadcast %cst_9 : f32 to vector<16x16xf32>
    %17 = arith.divf %15, %16 : vector<16x16xf32>
    %18 = math.exp %17 : vector<16x16xf32>
    %19 = tpu.iota {dimensions = array<i32: 0>} : vector<16x16xi32>
    %20 = tpu.iota {dimensions = array<i32: 1>} : vector<16x16xi32>
    %21 = arith.cmpi eq, %19, %20 : vector<16x16xi32>
    %cst_10 = arith.constant 0.000000e+00 : f32
    %22 = vector.broadcast %cst_10 : f32 to vector<16x16xf32>
    %23 = arith.select %21, %18, %22 : vector<16x16xi1>, vector<16x16xf32>
    %cst_11 = arith.constant dense<0.000000e+00> : vector<16xf32>
    %24 = vector.multi_reduction <add>, %23, %cst_11 [1] : vector<16x16xf32> to vector<16xf32>
    %25 = vector.shape_cast %24 : vector<16xf32> to vector<16x1xf32>
    %cst_12 = arith.constant dense<0.000000e+00> : vector<16xf32>
    %26 = vector.multi_reduction <add>, %18, %cst_12 [1] : vector<16x16xf32> to vector<16xf32>
    %27 = vector.shape_cast %26 : vector<16xf32> to vector<16x1xf32>
    %28 = arith.divf %25, %27 : vector<16x1xf32>
    %29 = math.log %28 : vector<16x1xf32>
    %cst_13 = arith.constant 0.000000e+00 : f32
    %30 = vector.broadcast %cst_13 : f32 to vector<16x1xf32>
    %31 = arith.subf %30, %29 : vector<16x1xf32>
    %cst_14 = arith.constant dense<0.000000e+00> : vector<1xf32>
    %32 = vector.multi_reduction <add>, %31, %cst_14 [0] : vector<16x1xf32> to vector<1xf32>
    %33 = vector.shape_cast %32 : vector<1xf32> to vector<1x1xf32>
    %cst_15 = arith.constant 6.250000e-03 : f32
    %34 = vector.broadcast %cst_15 : f32 to vector<1x1xf32>
    %35 = arith.mulf %33, %34 : vector<1x1xf32>
    %36 = tpu.iota {dimensions = array<i32: 0>} : vector<16x128xi32>
    %37 = tpu.iota {dimensions = array<i32: 1>} : vector<16x128xi32>
    %c0_i32 = arith.constant 0 : i32
    %38 = vector.broadcast %c0_i32 : i32 to vector<16x128xi32>
    %39 = arith.cmpi eq, %36, %38 : vector<16x128xi32>
    %c127_i32 = arith.constant 127 : i32
    %40 = vector.broadcast %c127_i32 : i32 to vector<16x128xi32>
    %41 = arith.cmpi eq, %37, %40 : vector<16x128xi32>
    %42 = arith.andi %39, %41 : vector<16x128xi1>
    %43 = vector.shape_cast %35 : vector<1x1xf32> to vector<1x1xf32>
    %44 = vector.broadcast %43 : vector<1x1xf32> to vector<16x128xf32>
    %45 = arith.select %42, %44, %6 : vector<16x128xi1>, vector<16x128xf32>
    %c0_16 = arith.constant 0 : index
    %c0_17 = arith.constant 0 : index
    %46 = vector.load %arg3[%c0_16, %c0_17] : memref<16x128xf32, #tpu.memory_space<vmem>>, vector<16x128xf32>
    tpu.vector_store %arg3[%c0_16, %c0_17], %45 {strides = array<i32>} : memref<16x128xf32, #tpu.memory_space<vmem>>, vector<16x128xf32>,
    return
  }
}

</mosaic_0001>

<llo_original>
// kernel: moe_forward.3
$region0: #{moe_forward.3}
  #allocation0 [shape = 'u32[]', space=smem, size = 0x4, offset = 0x4, fixed_abs, tag = 'smem constant byte address 0x4 - core index']
  #allocation1 [shape = 'u32[144,128]{1,0:T(1,128)}', space=vmem, size = 0x12000, scoped, tag = 'internal scratch']
  %s0 = inlined_call_operand.vmem [shape: f32[16,128], index: 0, kind: input, shape index: {}]
  %s1 = inlined_call_operand.vmem [shape: bf16[128,128], index: 1, kind: input, shape index: {}]
  %s2 = inlined_call_operand.vmem [shape: f32[1,128], index: 2, kind: input, shape index: {}]
  %s3 = inlined_call_operand.vmem [shape: f32[16,128], index: 3, kind: output, shape index: {}]
  %s4 = sld [smem:[#allocation0]]
  $region22: #{moe_forward.3} parent=0
    _
  %s6 = ssub.s32 1, %s4
  %s7 = scalar_select 0, %s6, %s4
  // Predicated region
  $region2: #{moe_forward.3} parent=0 // pred_check
    _
  $region3: #{moe_forward.3} parent=0 // pred_check_branch
    %9 = sbr.rel (0) target = $region5
  $region4: #{moe_forward.3} parent=0 // pred_region
    _
  $region5: #{moe_forward.3} parent=0 // pred_fallthru
    _
  // Predicated region
  $region6: #{moe_forward.3} parent=0 // pred_check
    _
  $region7: #{moe_forward.3} parent=0 // pred_check_branch
    %11 = sbr.rel (0) target = $region9
  $region8: #{moe_forward.3} parent=0 // pred_region
    _
  $region9: #{moe_forward.3} parent=0 // pred_fallthru
    _
  // Predicated region
  $region10: #{moe_forward.3} parent=0 // pred_check
    _
  $region11: #{moe_forward.3} parent=0 // pred_check_branch
    %13 = sbr.rel (0) target = $region13
  $region12: #{moe_forward.3} parent=0 // pred_region
    _
  $region13: #{moe_forward.3} parent=0 // pred_fallthru
    _
  %v15 = vld [vmem:[%s0] sm:$0xff]
  %v16 = vld [vmem:[%s0 + $0x8] sm:$0xff]
  %v17 = vpack.c.bf16 %v16, %v15
  %v18 = vld [vmem:[%s1] sm:$0xf]
  %v19 = vld [vmem:[%s1 + $0x4] sm:$0xf]
  %v20 = vld [vmem:[%s1 + $0x8] sm:$0xf]
  %v21 = vld [vmem:[%s1 + $0xc] sm:$0xf]
  %v22 = vld [vmem:[%s1 + $0x10] sm:$0xf]
  %v23 = vld [vmem:[%s1 + $0x14] sm:$0xf]
  %v24 = vld [vmem:[%s1 + $0x18] sm:$0xf]
  %v25 = vld [vmem:[%s1 + $0x1c] sm:$0xf]
  %v26 = vld [vmem:[%s1 + $0x20] sm:$0xf]
  %v27 = vld [vmem:[%s1 + $0x24] sm:$0xf]
  %v28 = vld [vmem:[%s1 + $0x28] sm:$0xf]
  %v29 = vld [vmem:[%s1 + $0x2c] sm:$0xf]
  %v30 = vld [vmem:[%s1 + $0x30] sm:$0xf]
  %v31 = vld [vmem:[%s1 + $0x34] sm:$0xf]
  %v32 = vld [vmem:[%s1 + $0x38] sm:$0xf]
  %v33 = vld [vmem:[%s1 + $0x3c] sm:$0xf]
  %v34 = vld [vmem:[%s2] sm:$0x1]
  %v36 = vlaneseq
  %v37 = vshrl.u32 %v36, 7
  %v38 = vsub.s32 0, %v37
  %v39 = vrot.slane %v34, %v38
  %v57 = vunpack.c.l.b16 %v18
  %v58 = vunpack.c.l.b16 %v19
  %v59 = vunpack.c.l.b16 %v20
  %v60 = vunpack.c.l.b16 %v21
  %v61 = vunpack.c.l.b16 %v22
  %v62 = vunpack.c.l.b16 %v23
  %v63 = vunpack.c.l.b16 %v24
  %v64 = vunpack.c.l.b16 %v25
  %v65 = vunpack.c.l.b16 %v26
  %v66 = vunpack.c.l.b16 %v27
  %v67 = vunpack.c.l.b16 %v28
  %v68 = vunpack.c.l.b16 %v29
  %v69 = vunpack.c.l.b16 %v30
  %v70 = vunpack.c.l.b16 %v31
  %v71 = vunpack.c.l.b16 %v32
  %v72 = vunpack.c.l.b16 %v33
  %v73 = vpack.c.b16 %v58, %v57
  %v74 = vpack.c.b16 %v60, %v59
  %v75 = vpack.c.b16 %v62, %v61
  %v76 = vpack.c.b16 %v64, %v63
  %v77 = vpack.c.b16 %v66, %v65
  %v78 = vpack.c.b16 %v68, %v67
  %v79 = vpack.c.b16 %v70, %v69
  %v80 = vpack.c.b16 %v72, %v71
  %89 = vmatprep.subr.bf16.mxu0 0
  %90 = vmatpush1.bf16.msra.mxu0 %v73
  %91 = vmatprep.subr.bf16.mxu0 0
  %92 = vmatpush1.bf16.msra.mxu0 %v74
  %93 = vmatprep.subr.bf16.mxu0 0
  %94 = vmatpush1.bf16.msra.mxu0 %v75
  %95 = vmatprep.subr.bf16.mxu0 0
  %96 = vmatpush1.bf16.msra.mxu0 %v76
  %97 = vmatprep.subr.bf16.mxu0 0
  %98 = vmatpush1.bf16.msra.mxu0 %v77
  %99 = vmatprep.subr.bf16.mxu0 0
  %100 = vmatpush1.bf16.msra.mxu0 %v78
  %101 = vmatprep.subr.bf16.mxu0 0
  %102 = vmatpush1.bf16.msra.mxu0 %v79
  %103 = vmatprep.subr.bf16.mxu0 0
  %104 = vmatpush1.bf16.msra.mxu0 %v80
  %105 = vmatprep.subr.bf16.mxu0 0
  %106 = vmatpush1.bf16.msra.mxu0 0
  %107 = vmatprep.subr.bf16.mxu0 0
  %108 = vmatpush1.bf16.msra.mxu0 0
  %109 = vmatprep.subr.bf16.mxu0 0
  %110 = vmatpush1.bf16.msra.mxu0 0
  %111 = vmatprep.subr.bf16.mxu0 0
  %112 = vmatpush1.bf16.msra.mxu0 0
  %113 = vmatprep.subr.bf16.mxu0 0
  %114 = vmatpush1.bf16.msra.mxu0 0
  %115 = vmatprep.subr.bf16.mxu0 0
  %116 = vmatpush1.bf16.msra.mxu0 0
  %117 = vmatprep.subr.bf16.mxu0 0
  %118 = vmatpush1.bf16.msra.mxu0 0
  %119 = vmatprep.subr.bf16.mxu0 0
  %120 = vmatpush1.bf16.msra.mxu0 0
  %121 = vmatprep.mubr.bf16.mxu0 0
  %122 = vmatmul.mubr.bf16.gmra.mrb[0].mxu0 %v17
  %v123 = vpop.f32.mrb[0].mxu0
  %v124 = vadd.f32 %v39, %v123
  %v125 = vpop.f32.mrb[0].mxu0
  %v126 = vpop.f32.mrb[0].mxu0
  %v127 = vadd.f32 %v39, %v126
  %v128 = vpop.f32.mrb[0].mxu0
  %129 = vdwg.mxu0
  %130 = vmatprep.subr.mxu0 0.0
  %131 = vmatpush1.xpose.msra.mxu0 %v15
  %132 = vmatprep.subr.mxu0 0.0
  %133 = vmatpush1.xpose.msra.mxu0 %v16
  %134 = vmatprep.subr.mxu0 0.0
  %135 = vmatpush1.xpose.msra.mxu0 0.0
  %136 = vmatprep.subr.mxu0 0.0
  %137 = vmatpush1.xpose.msra.mxu0 0.0
  %138 = vmatprep.subr.mxu0 0.0
  %139 = vmatpush1.xpose.msra.mxu0 0.0
  %140 = vmatprep.subr.mxu0 0.0
  %141 = vmatpush1.xpose.msra.mxu0 0.0
  %142 = vmatprep.subr.mxu0 0.0
  %143 = vmatpush1.xpose.msra.mxu0 0.0
  %144 = vmatprep.subr.mxu0 0.0
  %145 = vmatpush1.xpose.msra.mxu0 0.0
  %146 = vmatprep.subr.mxu0 0.0
  %147 = vmatpush1.xpose.msra.mxu0 0.0
  %148 = vmatprep.subr.mxu0 0.0
  %149 = vmatpush1.xpose.msra.mxu0 0.0
  %150 = vmatprep.subr.mxu0 0.0
  %151 = vmatpush1.xpose.msra.mxu0 0.0
  %152 = vmatprep.subr.mxu0 0.0
  %153 = vmatpush1.xpose.msra.mxu0 0.0
  %154 = vmatprep.subr.mxu0 0.0
  %155 = vmatpush1.xpose.msra.mxu0 0.0
  %156 = vmatprep.subr.mxu0 0.0
  %157 = vmatpush1.xpose.msra.mxu0 0.0
  %158 = vmatprep.subr.mxu0 0.0
  %159 = vmatpush1.xpose.msra.mxu0 0.0
  %160 = vmatprep.subr.mxu0 0.0
  %161 = vmatpush1.xpose.msra.mxu0 0.0
  %162 = vmatprep.subr.mxu0 0.0
  %163 = vmatpush1.xpose.msra.mxu0 0.0
  %164 = vmatprep.subr.mxu0 0.0
  %165 = vmatpush1.xpose.msra.mxu0 0.0
  %166 = vmatprep.subr.mxu0 0.0
  %167 = vmatpush1.xpose.msra.mxu0 0.0
  %168 = vmatprep.subr.mxu0 0.0
  %169 = vmatpush1.xpose.msra.mxu0 0.0
  %170 = vmatprep.subr.mxu0 0.0
  %171 = vmatpush1.xpose.msra.mxu0 0.0
  %172 = vmatprep.subr.mxu0 0.0
  %173 = vmatpush1.xpose.msra.mxu0 0.0
  %174 = vmatprep.subr.mxu0 0.0
  %175 = vmatpush1.xpose.msra.mxu0 0.0
  %176 = vmatprep.subr.mxu0 0.0
  %177 = vmatpush1.xpose.msra.mxu0 0.0
  %178 = vmatprep.subr.mxu0 0.0
  %179 = vmatpush1.xpose.msra.mxu0 0.0
  %180 = vmatprep.subr.mxu0 0.0
  %181 = vmatpush1.xpose.msra.mxu0 0.0
  %182 = vmatprep.subr.mxu0 0.0
  %183 = vmatpush1.xpose.msra.mxu0 0.0
  %184 = vmatprep.subr.mxu0 0.0
  %185 = vmatpush1.xpose.msra.mxu0 0.0
  %186 = vmatprep.subr.mxu0 0.0
  %187 = vmatpush1.xpose.msra.mxu0 0.0
  %188 = vmatprep.subr.mxu0 0.0
  %189 = vmatpush1.xpose.msra.mxu0 0.0
  %190 = vmatprep.subr.mxu0 0.0
  %191 = vmatpush1.xpose.msra.mxu0 0.0
  %192 = vmatprep.subr.mxu0 0.0
  %193 = vmatpush1.xpose.msra.mxu0 0.0
  %194 = vmatprep.mubr.f32.mxu0 0.0
  %195 = vmatmul.mubr.f32.gmra.mrb[0].mxu0 %v15
  %v196 = vpop.f32.mrb[0].mxu0
  %v197 = vadd.f32 0.0, %v196
  %v198 = vpop.f32.mrb[0].mxu0
  %199 = vmatprep.mubr.f32.mxu0 0.0
  %200 = vmatmul.mubr.f32.gmra.mrb[0].mxu0 %v16
  %v201 = vpop.f32.mrb[0].mxu0
  %v202 = vadd.f32 0.0, %v201
  %v203 = vpop.f32.mrb[0].mxu0
  %204 = vdwg.mxu0
  %v205 = vmul.f32 %v15, %v15
  %v206 = vmul.f32 %v16, %v16
  %207 = vadd.xlane.f32.xlu0 %v205
  %v208 = vpop.xlane.xlu0 %207
  %209 = vadd.xlane.f32.xlu0 %v206
  %v210 = vpop.xlane.xlu0 %209
  %v211 = vrsqrt.pop %v208
  %v212 = vmul.f32 %v208, %v211
  %vm213 = vcmp.eq.f32.partialorder %v208, inf
  %v214 = vsel %vm213, %v208, %v212
  %vm215 = vcmp.eq.f32.partialorder %v208, 0.0
  %v216 = vand.u32 %v208, 2147483648
  %v217 = vsel %vm215, %v216, %v214
  %v218 = vrsqrt.pop %v210
  %v219 = vmul.f32 %v210, %v218
  %vm220 = vcmp.eq.f32.partialorder %v210, inf
  %v221 = vsel %vm220, %v210, %v219
  %vm222 = vcmp.eq.f32.partialorder %v210, 0.0
  %v223 = vand.u32 %v210, 2147483648
  %v224 = vsel %vm222, %v223, %v221
  %vm225 = vcmask 7168
  %v227 = vsel %vm225, %v217, 0
  %v230 = vsel %vm225, %v224, 0
  %232 = vmatprep.subr.mxu0 0.0
  %233 = vmatpush1.xpose.msra.mxu0 %v227
  %234 = vmatprep.subr.mxu0 0.0
  %235 = vmatpush1.xpose.msra.mxu0 %v230
  %236 = vmatprep.subr.mxu0 0.0
  %237 = vmatpush1.xpose.msra.mxu0 0.0
  %238 = vmatprep.subr.mxu0 0.0
  %239 = vmatpush1.xpose.msra.mxu0 0.0
  %240 = vmatprep.subr.mxu0 0.0
  %241 = vmatpush1.xpose.msra.mxu0 0.0
  %242 = vmatprep.subr.mxu0 0.0
  %243 = vmatpush1.xpose.msra.mxu0 0.0
  %244 = vmatprep.subr.mxu0 0.0
  %245 = vmatpush1.xpose.msra.mxu0 0.0
  %246 = vmatprep.subr.mxu0 0.0
  %247 = vmatpush1.xpose.msra.mxu0 0.0
  %248 = vmatprep.subr.mxu0 0.0
  %249 = vmatpush1.xpose.msra.mxu0 0.0
  %250 = vmatprep.subr.mxu0 0.0
  %251 = vmatpush1.xpose.msra.mxu0 0.0
  %252 = vmatprep.subr.mxu0 0.0
  %253 = vmatpush1.xpose.msra.mxu0 0.0
  %254 = vmatprep.subr.mxu0 0.0
  %255 = vmatpush1.xpose.msra.mxu0 0.0
  %256 = vmatprep.subr.mxu0 0.0
  %257 = vmatpush1.xpose.msra.mxu0 0.0
  %258 = vmatprep.subr.mxu0 0.0
  %259 = vmatpush1.xpose.msra.mxu0 0.0
  %260 = vmatprep.subr.mxu0 0.0
  %261 = vmatpush1.xpose.msra.mxu0 0.0
  %262 = vmatprep.subr.mxu0 0.0
  %263 = vmatpush1.xpose.msra.mxu0 0.0
  %264 = vmatprep.subr.mxu0 0.0
  %265 = vmatpush1.xpose.msra.mxu0 0.0
  %266 = vmatprep.subr.mxu0 0.0
  %267 = vmatpush1.xpose.msra.mxu0 0.0
  %268 = vmatprep.subr.mxu0 0.0
  %269 = vmatpush1.xpose.msra.mxu0 0.0
  %270 = vmatprep.subr.mxu0 0.0
  %271 = vmatpush1.xpose.msra.mxu0 0.0
  %272 = vmatprep.subr.mxu0 0.0
  %273 = vmatpush1.xpose.msra.mxu0 0.0
  %274 = vmatprep.subr.mxu0 0.0
  %275 = vmatpush1.xpose.msra.mxu0 0.0
  %276 = vmatprep.subr.mxu0 0.0
  %277 = vmatpush1.xpose.msra.mxu0 0.0
  %278 = vmatprep.subr.mxu0 0.0
  %279 = vmatpush1.xpose.msra.mxu0 0.0
  %280 = vmatprep.subr.mxu0 0.0
  %281 = vmatpush1.xpose.msra.mxu0 0.0
  %282 = vmatprep.subr.mxu0 0.0
  %283 = vmatpush1.xpose.msra.mxu0 0.0
  %284 = vmatprep.subr.mxu0 0.0
  %285 = vmatpush1.xpose.msra.mxu0 0.0
  %286 = vmatprep.subr.mxu0 0.0
  %287 = vmatpush1.xpose.msra.mxu0 0.0
  %288 = vmatprep.subr.mxu0 0.0
  %289 = vmatpush1.xpose.msra.mxu0 0.0
  %290 = vmatprep.subr.mxu0 0.0
  %291 = vmatpush1.xpose.msra.mxu0 0.0
  %292 = vmatprep.subr.mxu0 0.0
  %293 = vmatpush1.xpose.msra.mxu0 0.0
  %294 = vmatprep.subr.mxu0 0.0
  %295 = vmatpush1.xpose.msra.mxu0 0.0
  %296 = vmatprep.mubr.f32.mxu0 0.0
  %297 = vmatmul.mubr.f32.gmra.mrb[0].mxu0 %v227
  %v298 = vpop.f32.mrb[0].mxu0
  %v299 = vadd.f32 0.0, %v298
  %v300 = vpop.f32.mrb[0].mxu0
  %301 = vmatprep.mubr.f32.mxu0 0.0
  %302 = vmatmul.mubr.f32.gmra.mrb[0].mxu0 %v230
  %v303 = vpop.f32.mrb[0].mxu0
  %v304 = vadd.f32 0.0, %v303
  %v305 = vpop.f32.mrb[0].mxu0
  %306 = vdwg.mxu0
  %v307 = vmax.f32 %v299, 1e-08
  %v308 = vmax.f32 %v304, 1e-08
  %v309 = vrcp.pop %v307
  %v310 = vmul.f32 %v197, %v309
  %v311 = vrcp.pop %v308
  %v312 = vmul.f32 %v202, %v311
  %v313 = vrcp.pop 0.1
  %v314 = vmul.f32 %v310, %v313
  %v315 = vmul.f32 %v312, %v313
  %v316 = vmul.f32 %v314, 1.442695
  %v317 = vpow.pop %v316
  %v318 = vmul.f32 %v315, 1.442695
  %v319 = vpow.pop %v318
  %v320 = vlaneseq
  %v321 = vshrl.u32 %v320, 7
  %v322 = vadd.s32 %v321, 8
  %v323 = vlaneseq
  %v324 = vand.u32 %v323, 127
  %vm325 = vcmp.eq.s32.totalorder %v321, %v324
  %vm326 = vcmp.eq.s32.totalorder %v322, %v324
  %v327 = vsel %vm325, %v317, 0.0
  %v328 = vsel %vm326, %v319, 0.0
  %vm329 = vcmask 130048
  %v330 = vsel %vm329, %v327, 0.0
  %331 = vadd.xlane.f32.xlu0 %v330
  %v332 = vpop.xlane.xlu0 %331
  %v333 = vsel %vm329, %v328, 0.0
  %334 = vadd.xlane.f32.xlu0 %v333
  %v335 = vpop.xlane.xlu0 %334
  %v336 = vsel %vm329, %v317, 0.0
  %337 = vadd.xlane.f32.xlu0 %v336
  %v338 = vpop.xlane.xlu0 %337
  %v339 = vsel %vm329, %v319, 0.0
  %340 = vadd.xlane.f32.xlu0 %v339
  %v341 = vpop.xlane.xlu0 %340
  %v342 = vrcp.pop %v338
  %v343 = vmul.f32 %v332, %v342
  %v344 = vrcp.pop %v341
  %v345 = vmul.f32 %v335, %v344
  %v346 = vlog2.pop %v343
  %v347 = vmul.f32 %v346, 0.6931472
  %v348 = vlog2.pop %v345
  %v349 = vmul.f32 %v348, 0.6931472
  %v350 = vsub.f32 0.0, %v347
  %v351 = vsub.f32 0.0, %v349
  %v352 = vadd.f32 %v350, %v351
  %v353 = vrot.slane %v352, 4
  %v354 = vadd.f32 %v352, %v353
  %v355 = vrot.slane %v354, 2
  %v356 = vadd.f32 %v354, %v355
  %v357 = vrot.slane %v356, 1
  %v358 = vadd.f32 %v356, %v357
  %v359 = vmul.f32 %v358, 0.00625
  %vm360 = vcmp.eq.s32.totalorder %v321, 0
  %vm361 = vcmp.eq.s32.totalorder %v322, 0
  %vm362 = vcmp.eq.s32.totalorder %v324, 127
  %vm363 = vmand %vm360, %vm362
  %vm364 = vmand %vm361, %vm362
  %v365 = vsel %vm363, %v359, %v124
  %v366 = vsel %vm364, %v359, %v127
  %367 = vst [vmem:[%s3] sm:$0xff] %v365
  %368 = vst [vmem:[%s3 + $0x8] sm:$0xff] %v366
  // Predicated region
  $region14: #{moe_forward.3} parent=0 // pred_check
    _
  $region15: #{moe_forward.3} parent=0 // pred_check_branch
    %370 = sbr.rel (0) target = $region17
  $region16: #{moe_forward.3} parent=0 // pred_region
    _
  $region17: #{moe_forward.3} parent=0 // pred_fallthru
    _
  // Predicated region
  $region18: #{moe_forward.3} parent=0 // pred_check
    _
  $region19: #{moe_forward.3} parent=0 // pred_check_branch
    %372 = sbr.rel (0) target = $region21
  $region20: #{moe_forward.3} parent=0 // pred_region
    _
  $region21: #{moe_forward.3} parent=0 // pred_fallthru
    _

// kernel: moe_forward.2
$region0: #{moe_forward.2}
  #allocation0 [shape = 'u32[]', space=smem, size = 0x4, offset = 0x4, fixed_abs, tag = 'smem constant byte address 0x4 - core index']
  #allocation1 [shape = 'u32[144,128]{1,0:T(1,128)}', space=vmem, size = 0x12000, scoped, tag = 'internal scratch']
  %s0 = inlined_call_operand.vmem [shape: bf16[128,128], index: 0, kind: input, shape index: {}]
  %s1 = inlined_call_operand.vmem [shape: f32[128,1], index: 1, kind: input, shape index: {}]
  %s2 = inlined_call_operand.vmem [shape: bf16[128,640], index: 2, kind: input, shape index: {}]
  %s3 = inlined_call_operand.vmem [shape: f32[128,128], index: 3, kind: input, shape index: {}]
  %s4 = inlined_call_operand.vmem [shape: f32[16,128], index: 4, kind: output, shape index: {}]
  %s5 = sld [smem:[#allocation0]]
  $region49: #{moe_forward.2} parent=0
    _
  %s7 = ssub.s32 1, %s5
  %s8 = scalar_select 0, %s7, %s5
  loop: start=0, step=1, limit=4
  $region2: #{moe_forward.2} parent=0 // loop_pre_header
    _
  $region3: #{moe_forward.2} parent=0 // loop_header
    %s10 = sphi 0, %s14
    %p11 = scmp.ge.s32.totalorder %s10, 4
    %s20 = sphi 0, %s22
    %s23 = sphi 0, %s20
    %s24 = sphi 0, %s23
    %s40 = sphi 0, %s24
    %s46 = sphi 0, %s48
    %s49 = sphi 0, %s46
    %s50 = sphi 0, %s49
    %s66 = sphi 0, %s50
    %s70 = sphi 0, %s70
    %s72 = sphi 0, %s70
    %s73 = sphi 0, %s72
    %s87 = sphi 0, %s73
    %s91 = sphi 0, %s91
    %s93 = sphi 0, %s91
    %s94 = sphi 0, %s93
    %s108 = sphi 0, %s94
    %s114 = sphi 0, %s116
    %s117 = sphi 0, %s114
    %s118 = sphi 0, %s117
    %s134 = sphi 0, %s118
  $region4: #{moe_forward.2} parent=0 // loop_header_branch
    %13 = sbr.rel (%p11) target = $region8
  $region5: #{moe_forward.2} parent=0 // loop_body
    %s15 = ssub.s32 %s10, 1
    %s16 = ssub.s32 %s10, 2
    %s17 = sadd.s32 %s10, 1
    %s18 = ssub.s32 %s10, %s17
    %p19 = scmp.eq.s32.totalorder %s18, 0
    %s21 = sadd.s32 %s20, 1
    %s22 = scalar_select %p19, %s20, %s21
    %p25 = pneg %p19
    %p26 = scmp.eq.s32.totalorder %s10, 1
    %p27 = por %p25, %p26
    %p28 = scmp.ne.s32.totalorder %s20, %s23
    %p29 = scmp.eq.s32.totalorder %s10, 0
    %p30 = por %p28, %p29
    %p31 = scmp.ne.s32.totalorder %s20, %s23
    %p32 = scmp.eq.s32.totalorder %s15, 1
    %p33 = por %p31, %p32
    %p34 = scmp.ne.s32.totalorder %s23, %s24
    %p35 = scmp.eq.s32.totalorder %s15, 0
    %p36 = por %p34, %p35
    %p37 = scmp.ne.s32.totalorder %s23, %s24
    %p38 = scmp.eq.s32.totalorder %s16, 1
    %p39 = por %p37, %p38
    %p41 = scmp.ne.s32.totalorder %s24, %s40
    %p42 = scmp.eq.s32.totalorder %s16, 0
    %p43 = por %p41, %p42
    %s44 = ssub.s32 %s10, %s17
    %p45 = scmp.eq.s32.totalorder %s44, 0
    %s47 = sadd.s32 %s46, 1
    %s48 = scalar_select %p45, %s46, %s47
    %p51 = pneg %p45
    %p52 = scmp.eq.s32.totalorder %s10, 1
    %p53 = por %p51, %p52
    %p54 = scmp.ne.s32.totalorder %s46, %s49
    %p55 = scmp.eq.s32.totalorder %s10, 0
    %p56 = por %p54, %p55
    %p57 = scmp.ne.s32.totalorder %s46, %s49
    %p58 = scmp.eq.s32.totalorder %s15, 1
    %p59 = por %p57, %p58
    %p60 = scmp.ne.s32.totalorder %s49, %s50
    %p61 = scmp.eq.s32.totalorder %s15, 0
    %p62 = por %p60, %p61
    %p63 = scmp.ne.s32.totalorder %s49, %s50
    %p64 = scmp.eq.s32.totalorder %s16, 1
    %p65 = por %p63, %p64
    %p67 = scmp.ne.s32.totalorder %s50, %s66
    %p68 = scmp.eq.s32.totalorder %s16, 0
    %p69 = por %p67, %p68
    %s71 = sadd.s32 %s70, 1
    %p74 = scmp.eq.s32.totalorder %s10, 1
    %p75 = scmp.ne.s32.totalorder %s70, %s72
    %p76 = scmp.eq.s32.totalorder %s10, 0
    %p77 = por %p75, %p76
    %p78 = scmp.ne.s32.totalorder %s70, %s72
    %p79 = scmp.eq.s32.totalorder %s15, 1
    %p80 = por %p78, %p79
    %p81 = scmp.ne.s32.totalorder %s72, %s73
    %p82 = scmp.eq.s32.totalorder %s15, 0
    %p83 = por %p81, %p82
    %p84 = scmp.ne.s32.totalorder %s72, %s73
    %p85 = scmp.eq.s32.totalorder %s16, 1
    %p86 = por %p84, %p85
    %p88 = scmp.ne.s32.totalorder %s73, %s87
    %p89 = scmp.eq.s32.totalorder %s16, 0
    %p90 = por %p88, %p89
    %s92 = sadd.s32 %s91, 1
    %p95 = scmp.eq.s32.totalorder %s10, 1
    %p96 = scmp.ne.s32.totalorder %s91, %s93
    %p97 = scmp.eq.s32.totalorder %s10, 0
    %p98 = por %p96, %p97
    %p99 = scmp.ne.s32.totalorder %s91, %s93
    %p100 = scmp.eq.s32.totalorder %s15, 1
    %p101 = por %p99, %p100
    %p102 = scmp.ne.s32.totalorder %s93, %s94
    %p103 = scmp.eq.s32.totalorder %s15, 0
    %p104 = por %p102, %p103
    %p105 = scmp.ne.s32.totalorder %s93, %s94
    %p106 = scmp.eq.s32.totalorder %s16, 1
    %p107 = por %p105, %p106
    %p109 = scmp.ne.s32.totalorder %s94, %s108
    %p110 = scmp.eq.s32.totalorder %s16, 0
    %p111 = por %p109, %p110
    %s112 = ssub.s32 %s10, %s17
    %p113 = scmp.eq.s32.totalorder %s112, 0
    %s115 = sadd.s32 %s114, 1
    %s116 = scalar_select %p113, %s114, %s115
    %p119 = pneg %p113
    %p120 = scmp.eq.s32.totalorder %s10, 1
    %p121 = por %p119, %p120
    %p122 = scmp.ne.s32.totalorder %s114, %s117
    %p123 = scmp.eq.s32.totalorder %s10, 0
    %p124 = por %p122, %p123
    %p125 = scmp.ne.s32.totalorder %s114, %s117
    %p126 = scmp.eq.s32.totalorder %s15, 1
    %p127 = por %p125, %p126
    %p128 = scmp.ne.s32.totalorder %s117, %s118
    %p129 = scmp.eq.s32.totalorder %s15, 0
    %p130 = por %p128, %p129
    %p131 = scmp.ne.s32.totalorder %s117, %s118
    %p132 = scmp.eq.s32.totalorder %s16, 1
    %p133 = por %p131, %p132
    %p135 = scmp.ne.s32.totalorder %s118, %s134
    %p136 = scmp.eq.s32.totalorder %s16, 0
    %p137 = por %p135, %p136
    %p138 = scmp.le.s32.totalorder 1, %s10
    %p139 = scmp.lt.s32.totalorder %s10, 3
    %p140 = pnand %p138, %p139
    %p141 = pneg %p140
    // Predicated region
    $region9: #{moe_forward.2} parent=5 // pred_check
      _
    $region10: #{moe_forward.2} parent=5 // pred_check_branch
      %143 = sbr.rel (%p140) target = $region12
    $region11: #{moe_forward.2} parent=5 // pred_region
      %s144 = ssub.s32 %s10, 1
      // Predicated region
      $region13: #{moe_forward.2} parent=11 // pred_check
        %p145 = pneg %p83
      $region14: #{moe_forward.2} parent=11 // pred_check_branch
        %147 = sbr.rel (%p145) target = $region16
      $region15: #{moe_forward.2} parent=11 // pred_region
        _
      $region16: #{moe_forward.2} parent=11 // pred_fallthru
        _
      // Predicated region
      $region17: #{moe_forward.2} parent=11 // pred_check
        %p148 = pneg %p104
      $region18: #{moe_forward.2} parent=11 // pred_check_branch
        %150 = sbr.rel (%p148) target = $region20
      $region19: #{moe_forward.2} parent=11 // pred_region
        _
      $region20: #{moe_forward.2} parent=11 // pred_fallthru
        _
    $region12: #{moe_forward.2} parent=5 // pred_fallthru
      _
    %p151 = scmp.lt.s32.totalorder %s10, 2
    // Predicated region
    $region21: #{moe_forward.2} parent=5 // pred_check
      %p152 = pneg %p151
    $region22: #{moe_forward.2} parent=5 // pred_check_branch
      %154 = sbr.rel (%p152) target = $region24
    $region23: #{moe_forward.2} parent=5 // pred_region
      // Predicated region
      $region25: #{moe_forward.2} parent=23 // pred_check
        %p155 = pneg %p30
      $region26: #{moe_forward.2} parent=23 // pred_check_branch
        %157 = sbr.rel (%p155) target = $region28
      $region27: #{moe_forward.2} parent=23 // pred_region
        %s158 = smul.u32 8, %s10
        %p159 = scmp.lt.s32.totalorder %s158, 15
        %s160 = scalar_select %p159, %s158, 15
        %s161 = smul.addr %s160, 4
        %s162 = scalar_lea.vmem %s0, %s161
        %s163 = smul.u32 8, %s10
      $region28: #{moe_forward.2} parent=23 // pred_fallthru
        _
      // Predicated region
      $region29: #{moe_forward.2} parent=23 // pred_check
        %p164 = pneg %p56
      $region30: #{moe_forward.2} parent=23 // pred_check_branch
        %166 = sbr.rel (%p164) target = $region32
      $region31: #{moe_forward.2} parent=23 // pred_region
        %s167 = smul.u32 8, %s10
        %p168 = scmp.lt.s32.totalorder %s167, 15
        %s169 = scalar_select %p168, %s167, 15
        %s170 = smul.addr %s169, 8
        %s171 = scalar_lea.vmem %s1, %s170
        %s172 = smul.u32 8, %s10
      $region32: #{moe_forward.2} parent=23 // pred_fallthru
        _
    $region24: #{moe_forward.2} parent=5 // pred_fallthru
      _
    %p173 = scmp.le.s32.totalorder 1, %s10
    %p174 = scmp.lt.s32.totalorder %s10, 3
    %p175 = pnand %p173, %p174
    %p176 = pneg %p175
    // Predicated region
    $region33: #{moe_forward.2} parent=5 // pred_check
      _
    $region34: #{moe_forward.2} parent=5 // pred_check_branch
      %178 = sbr.rel (%p175) target = $region36
    $region35: #{moe_forward.2} parent=5 // pred_region
      %s179 = ssub.s32 %s10, 1
      %s180 = smul.u32 8, %s15
      %p181 = scmp.lt.s32.totalorder %s180, 15
      %s182 = scalar_select %p181, %s180, 15
      %s183 = smul.addr %s182, 4
      %s184 = scalar_lea.vmem %s0, %s183
      %p185 = pneg %p36
      %p186 = pneg %p33
      %s187 = smul.u32 8, %s15
      %p188 = scmp.lt.s32.totalorder %s187, 15
      %s189 = scalar_select %p188, %s187, 15
      %s190 = smul.addr %s189, 8
      %s191 = scalar_lea.vmem %s1, %s190
      %p192 = pneg %p62
      %p193 = pneg %p59
      %p194 = pneg %p83
      %p195 = pneg %p80
      %p196 = pneg %p104
      %p197 = pneg %p101
      %p198 = pneg %p130
      %p199 = pneg %p127
      %p200 = scmp.lt.s32.totalorder %s15, 1
      %s201 = scalar_select %p200, %s15, 1
      %s202 = smul.addr %s201, 8
      %s203 = scalar_lea.vmem %s4, %s202
      %s204 = smul.u32 8, %s15
      %p205 = scmp.lt.s32.totalorder %s204, 15
      %s206 = scalar_select %p205, %s204, 15
      %s207 = smul.addr %s206, 4
      %s208 = scalar_lea.vmem %s0, %s207
      %s209 = smul.u32 8, %s15
      %s210 = smul.u32 8, %s15
      %p211 = scmp.lt.s32.totalorder %s210, 15
      %s212 = scalar_select %p211, %s210, 15
      %s213 = smul.addr %s212, 8
      %s214 = scalar_lea.vmem %s1, %s213
      %s215 = smul.u32 8, %s15
      %p216 = scmp.lt.s32.totalorder %s15, 1
      %s217 = scalar_select %p216, %s15, 1
      %s218 = smul.addr %s217, 8
      %s219 = scalar_lea.vmem %s4, %s218
      %v221 = vld [vmem:[%s208] sm:$0xf]
      %v222 = vld [vmem:[%s208 + $0x4] sm:$0xf]
      %v223 = vld [vmem:[%s208 + $0x8] sm:$0xf]
      %v224 = vld [vmem:[%s208 + $0xc] sm:$0xf]
      %v225 = vld [vmem:[%s208 + $0x10] sm:$0xf]
      %v226 = vld [vmem:[%s208 + $0x14] sm:$0xf]
      %v227 = vld [vmem:[%s208 + $0x18] sm:$0xf]
      %v228 = vld [vmem:[%s208 + $0x1c] sm:$0xf]
      %v229 = vld [vmem:[%s2] sm:$0xff]
      %v230 = vld [vmem:[%s2 + $0x8] sm:$0xff]
      %v231 = vld [vmem:[%s2 + $0x10] sm:$0xf]
      %v232 = vld [vmem:[%s2 + $0x14] sm:$0xff]
      %v233 = vld [vmem:[%s2 + $0x1c] sm:$0xff]
      %v234 = vld [vmem:[%s2 + $0x24] sm:$0xf]
      %v235 = vld [vmem:[%s2 + $0x28] sm:$0xff]
      %v236 = vld [vmem:[%s2 + $0x30] sm:$0xff]
      %v237 = vld [vmem:[%s2 + $0x38] sm:$0xf]
      %v238 = vld [vmem:[%s2 + $0x3c] sm:$0xff]
      %v239 = vld [vmem:[%s2 + $0x44] sm:$0xff]
      %v240 = vld [vmem:[%s2 + $0x4c] sm:$0xf]
      %v241 = vld [vmem:[%s2 + $0x50] sm:$0xff]
      %v242 = vld [vmem:[%s2 + $0x58] sm:$0xff]
      %v243 = vld [vmem:[%s2 + $0x60] sm:$0xf]
      %v244 = vld [vmem:[%s2 + $0x64] sm:$0xff]
      %v245 = vld [vmem:[%s2 + $0x6c] sm:$0xff]
      %v246 = vld [vmem:[%s2 + $0x74] sm:$0xf]
      %v247 = vld [vmem:[%s2 + $0x78] sm:$0xff]
      %v248 = vld [vmem:[%s2 + $0x80] sm:$0xff]
      %v249 = vld [vmem:[%s2 + $0x88] sm:$0xf]
      %v250 = vld [vmem:[%s2 + $0x8c] sm:$0xff]
      %v251 = vld [vmem:[%s2 + $0x94] sm:$0xff]
      %v252 = vld [vmem:[%s2 + $0x9c] sm:$0xf]
      %v253 = vld [vmem:[%s2 + $0xa0] sm:$0xff]
      %v254 = vld [vmem:[%s2 + $0xa8] sm:$0xff]
      %v255 = vld [vmem:[%s2 + $0xb0] sm:$0xf]
      %v256 = vld [vmem:[%s2 + $0xb4] sm:$0xff]
      %v257 = vld [vmem:[%s2 + $0xbc] sm:$0xff]
      %v258 = vld [vmem:[%s2 + $0xc4] sm:$0xf]
      %v259 = vld [vmem:[%s2 + $0xc8] sm:$0xff]
      %v260 = vld [vmem:[%s2 + $0xd0] sm:$0xff]
      %v261 = vld [vmem:[%s2 + $0xd8] sm:$0xf]
      %v262 = vld [vmem:[%s2 + $0xdc] sm:$0xff]
      %v263 = vld [vmem:[%s2 + $0xe4] sm:$0xff]
      %v264 = vld [vmem:[%s2 + $0xec] sm:$0xf]
      %v265 = vld [vmem:[%s2 + $0xf0] sm:$0xff]
      %v266 = vld [vmem:[%s2 + $0xf8] sm:$0xff]
      %v267 = vld [vmem:[%s2 + $0x100] sm:$0xf]
      %v268 = vld [vmem:[%s2 + $0x104] sm:$0xff]
      %v269 = vld [vmem:[%s2 + $0x10c] sm:$0xff]
      %v270 = vld [vmem:[%s2 + $0x114] sm:$0xf]
      %v271 = vld [vmem:[%s2 + $0x118] sm:$0xff]
      %v272 = vld [vmem:[%s2 + $0x120] sm:$0xff]
      %v273 = vld [vmem:[%s2 + $0x128] sm:$0xf]
      %v274 = vld [vmem:[%s2 + $0x12c] sm:$0xff]
      %v275 = vld [vmem:[%s2 + $0x134] sm:$0xff]
      %v276 = vld [vmem:[%s2 + $0x13c] sm:$0xf]
      %v285 = vunpack.c.l.b16 %v221
      %v286 = vunpack.c.l.b16 %v222
      %v287 = vunpack.c.l.b16 %v223
      %v288 = vunpack.c.l.b16 %v224
      %v289 = vunpack.c.l.b16 %v225
      %v290 = vunpack.c.l.b16 %v226
      %v291 = vunpack.c.l.b16 %v227
      %v292 = vunpack.c.l.b16 %v228
      %v293 = vpack.c.b16 %v286, %v285
      %v294 = vpack.c.b16 %v288, %v287
      %v295 = vpack.c.b16 %v290, %v289
      %v296 = vpack.c.b16 %v292, %v291
      %v349 = vunpack.c.l.b16 %v229
      %v350 = vunpack.c.h.b16 %v229
      %v351 = vunpack.c.l.b16 %v230
      %v352 = vunpack.c.h.b16 %v230
      %v353 = vunpack.c.l.b16 %v231
      %v354 = vunpack.c.l.b16 %v232
      %v355 = vunpack.c.h.b16 %v232
      %v356 = vunpack.c.l.b16 %v233
      %v357 = vunpack.c.h.b16 %v233
      %v358 = vunpack.c.l.b16 %v234
      %v359 = vunpack.c.l.b16 %v235
      %v360 = vunpack.c.h.b16 %v235
      %v361 = vunpack.c.l.b16 %v236
      %v362 = vunpack.c.h.b16 %v236
      %v363 = vunpack.c.l.b16 %v237
      %v364 = vunpack.c.l.b16 %v238
      %v365 = vunpack.c.h.b16 %v238
      %v366 = vunpack.c.l.b16 %v239
      %v367 = vunpack.c.h.b16 %v239
      %v368 = vunpack.c.l.b16 %v240
      %v369 = vunpack.c.l.b16 %v241
      %v370 = vunpack.c.h.b16 %v241
      %v371 = vunpack.c.l.b16 %v242
      %v372 = vunpack.c.h.b16 %v242
      %v373 = vunpack.c.l.b16 %v243
      %v374 = vunpack.c.l.b16 %v244
      %v375 = vunpack.c.h.b16 %v244
      %v376 = vunpack.c.l.b16 %v245
      %v377 = vunpack.c.h.b16 %v245
      %v378 = vunpack.c.l.b16 %v246
      %v379 = vunpack.c.l.b16 %v247
      %v380 = vunpack.c.h.b16 %v247
      %v381 = vunpack.c.l.b16 %v248
      %v382 = vunpack.c.h.b16 %v248
      %v383 = vunpack.c.l.b16 %v249
      %v384 = vunpack.c.l.b16 %v250
      %v385 = vunpack.c.h.b16 %v250
      %v386 = vunpack.c.l.b16 %v251
      %v387 = vunpack.c.h.b16 %v251
      %v388 = vunpack.c.l.b16 %v252
      %v389 = vunpack.c.l.b16 %v253
      %v390 = vunpack.c.h.b16 %v253
      %v391 = vunpack.c.l.b16 %v254
      %v392 = vunpack.c.h.b16 %v254
      %v393 = vunpack.c.l.b16 %v255
      %v394 = vunpack.c.l.b16 %v256
      %v395 = vunpack.c.h.b16 %v256
      %v396 = vunpack.c.l.b16 %v257
      %v397 = vunpack.c.h.b16 %v257
      %v398 = vunpack.c.l.b16 %v258
      %v399 = vunpack.c.l.b16 %v259
      %v400 = vunpack.c.h.b16 %v259
      %v401 = vunpack.c.l.b16 %v260
      %v402 = vunpack.c.h.b16 %v260
      %v403 = vunpack.c.l.b16 %v261
      %v404 = vunpack.c.l.b16 %v262
      %v405 = vunpack.c.h.b16 %v262
      %v406 = vunpack.c.l.b16 %v263
      %v407 = vunpack.c.h.b16 %v263
      %v408 = vunpack.c.l.b16 %v264
      %v409 = vunpack.c.l.b16 %v265
      %v410 = vunpack.c.h.b16 %v265
      %v411 = vunpack.c.l.b16 %v266
      %v412 = vunpack.c.h.b16 %v266
      %v413 = vunpack.c.l.b16 %v267
      %v414 = vunpack.c.l.b16 %v268
      %v415 = vunpack.c.h.b16 %v268
      %v416 = vunpack.c.l.b16 %v269
      %v417 = vunpack.c.h.b16 %v269
      %v418 = vunpack.c.l.b16 %v270
      %v419 = vunpack.c.l.b16 %v271
      %v420 = vunpack.c.h.b16 %v271
      %v421 = vunpack.c.l.b16 %v272
      %v422 = vunpack.c.h.b16 %v272
      %v423 = vunpack.c.l.b16 %v273
      %v424 = vunpack.c.l.b16 %v274
      %v425 = vunpack.c.h.b16 %v274
      %v426 = vunpack.c.l.b16 %v275
      %v427 = vunpack.c.h.b16 %v275
      %v428 = vunpack.c.l.b16 %v276
      %v429 = vpack.c.b16 %v354, %v349
      %v430 = vpack.c.b16 %v355, %v350
      %v431 = vpack.c.b16 %v356, %v351
      %v432 = vpack.c.b16 %v357, %v352
      %v433 = vpack.c.b16 %v358, %v353
      %v434 = vpack.c.b16 %v364, %v359
      %v435 = vpack.c.b16 %v365, %v360
      %v436 = vpack.c.b16 %v366, %v361
      %v437 = vpack.c.b16 %v367, %v362
      %v438 = vpack.c.b16 %v368, %v363
      %v439 = vpack.c.b16 %v374, %v369
      %v440 = vpack.c.b16 %v375, %v370
      %v441 = vpack.c.b16 %v376, %v371
      %v442 = vpack.c.b16 %v377, %v372
      %v443 = vpack.c.b16 %v378, %v373
      %v444 = vpack.c.b16 %v384, %v379
      %v445 = vpack.c.b16 %v385, %v380
      %v446 = vpack.c.b16 %v386, %v381
      %v447 = vpack.c.b16 %v387, %v382
      %v448 = vpack.c.b16 %v388, %v383
      %v449 = vpack.c.b16 %v394, %v389
      %v450 = vpack.c.b16 %v395, %v390
      %v451 = vpack.c.b16 %v396, %v391
      %v452 = vpack.c.b16 %v397, %v392
      %v453 = vpack.c.b16 %v398, %v393
      %v454 = vpack.c.b16 %v404, %v399
      %v455 = vpack.c.b16 %v405, %v400
      %v456 = vpack.c.b16 %v406, %v401
      %v457 = vpack.c.b16 %v407, %v402
      %v458 = vpack.c.b16 %v408, %v403
      %v459 = vpack.c.b16 %v414, %v409
      %v460 = vpack.c.b16 %v415, %v410
      %v461 = vpack.c.b16 %v416, %v411
      %v462 = vpack.c.b16 %v417, %v412
      %v463 = vpack.c.b16 %v418, %v413
      %v464 = vpack.c.b16 %v424, %v419
      %v465 = vpack.c.b16 %v425, %v420
      %v466 = vpack.c.b16 %v426, %v421
      %v467 = vpack.c.b16 %v427, %v422
      %v468 = vpack.c.b16 %v428, %v423
      %509 = vmatprep.subr.bf16.mxu0 %v430
      %510 = vmatpush1.bf16.msra.mxu0 %v429
      %511 = vmatprep.subr.bf16.mxu0 %v435
      %512 = vmatpush1.bf16.msra.mxu0 %v434
      %513 = vmatprep.subr.bf16.mxu0 %v440
      %514 = vmatpush1.bf16.msra.mxu0 %v439
      %515 = vmatprep.subr.bf16.mxu0 %v445
      %516 = vmatpush1.bf16.msra.mxu0 %v444
      %517 = vmatprep.subr.bf16.mxu0 %v450
      %518 = vmatpush1.bf16.msra.mxu0 %v449
      %519 = vmatprep.subr.bf16.mxu0 %v455
      %520 = vmatpush1.bf16.msra.mxu0 %v454
      %521 = vmatprep.subr.bf16.mxu0 %v460
      %522 = vmatpush1.bf16.msra.mxu0 %v459
      %523 = vmatprep.subr.bf16.mxu0 %v465
      %524 = vmatpush1.bf16.msra.mxu0 %v464
      %525 = vmatprep.subr.bf16.mxu0 0
      %526 = vmatpush1.bf16.msra.mxu0 0
      %527 = vmatprep.subr.bf16.mxu0 0
      %528 = vmatpush1.bf16.msra.mxu0 0
      %529 = vmatprep.subr.bf16.mxu0 0
      %530 = vmatpush1.bf16.msra.mxu0 0
      %531 = vmatprep.subr.bf16.mxu0 0
      %532 = vmatpush1.bf16.msra.mxu0 0
      %533 = vmatprep.subr.bf16.mxu0 0
      %534 = vmatpush1.bf16.msra.mxu0 0
      %535 = vmatprep.subr.bf16.mxu0 0
      %536 = vmatpush1.bf16.msra.mxu0 0
      %537 = vmatprep.subr.bf16.mxu0 0
      %538 = vmatpush1.bf16.msra.mxu0 0
      %539 = vmatprep.subr.bf16.mxu0 0
      %540 = vmatpush1.bf16.msra.mxu0 0
      %541 = vmatprep.mubr.bf16.mxu0 0
      %542 = vmatmul.mubr.bf16.gmra.mrb[0].mxu0 %v293
      %v543 = vpop.f32.mrb[0].mxu0
      %v544 = vadd.f32 0.0, %v543
      %v545 = vpop.f32.mrb[0].mxu0
      %v546 = vadd.f32 0.0, %v545
      %v547 = vpop.f32.mrb[0].mxu0
      %v548 = vadd.f32 0.0, %v547
      %v549 = vpop.f32.mrb[0].mxu0
      %v550 = vadd.f32 0.0, %v549
      %551 = vmatprep.mubr.bf16.mxu0 0
      %552 = vmatmul.mubr.bf16.gmra.mrb[0].mxu0 %v294
      %v553 = vpop.f32.mrb[0].mxu0
      %v554 = vadd.f32 0.0, %v553
      %v555 = vpop.f32.mrb[0].mxu0
      %v556 = vadd.f32 0.0, %v555
      %v557 = vpop.f32.mrb[0].mxu0
      %v558 = vadd.f32 0.0, %v557
      %v559 = vpop.f32.mrb[0].mxu0
      %v560 = vadd.f32 0.0, %v559
      %561 = vmatprep.mubr.bf16.mxu0 0
      %562 = vmatmul.mubr.bf16.gmra.mrb[0].mxu0 %v295
      %v563 = vpop.f32.mrb[0].mxu0
      %v564 = vadd.f32 0.0, %v563
      %v565 = vpop.f32.mrb[0].mxu0
      %v566 = vadd.f32 0.0, %v565
      %v567 = vpop.f32.mrb[0].mxu0
      %v568 = vadd.f32 0.0, %v567
      %v569 = vpop.f32.mrb[0].mxu0
      %v570 = vadd.f32 0.0, %v569
      %571 = vmatprep.mubr.bf16.mxu0 0
      %572 = vmatmul.mubr.bf16.gmra.mrb[0].mxu0 %v296
      %v573 = vpop.f32.mrb[0].mxu0
      %v574 = vadd.f32 0.0, %v573
      %v575 = vpop.f32.mrb[0].mxu0
      %v576 = vadd.f32 0.0, %v575
      %v577 = vpop.f32.mrb[0].mxu0
      %v578 = vadd.f32 0.0, %v577
      %v579 = vpop.f32.mrb[0].mxu0
      %v580 = vadd.f32 0.0, %v579
      %581 = vdwg.mxu0
      %582 = vmatprep.subr.bf16.mxu0 %v432
      %583 = vmatpush1.bf16.msra.mxu0 %v431
      %584 = vmatprep.subr.bf16.mxu0 %v437
      %585 = vmatpush1.bf16.msra.mxu0 %v436
      %586 = vmatprep.subr.bf16.mxu0 %v442
      %587 = vmatpush1.bf16.msra.mxu0 %v441
      %588 = vmatprep.subr.bf16.mxu0 %v447
      %589 = vmatpush1.bf16.msra.mxu0 %v446
      %590 = vmatprep.subr.bf16.mxu0 %v452
      %591 = vmatpush1.bf16.msra.mxu0 %v451
      %592 = vmatprep.subr.bf16.mxu0 %v457
      %593 = vmatpush1.bf16.msra.mxu0 %v456
      %594 = vmatprep.subr.bf16.mxu0 %v462
      %595 = vmatpush1.bf16.msra.mxu0 %v461
      %596 = vmatprep.subr.bf16.mxu0 %v467
      %597 = vmatpush1.bf16.msra.mxu0 %v466
      %598 = vmatprep.subr.bf16.mxu0 0
      %599 = vmatpush1.bf16.msra.mxu0 0
      %600 = vmatprep.subr.bf16.mxu0 0
      %601 = vmatpush1.bf16.msra.mxu0 0
      %602 = vmatprep.subr.bf16.mxu0 0
      %603 = vmatpush1.bf16.msra.mxu0 0
      %604 = vmatprep.subr.bf16.mxu0 0
      %605 = vmatpush1.bf16.msra.mxu0 0
      %606 = vmatprep.subr.bf16.mxu0 0
      %607 = vmatpush1.bf16.msra.mxu0 0
      %608 = vmatprep.subr.bf16.mxu0 0
      %609 = vmatpush1.bf16.msra.mxu0 0
      %610 = vmatprep.subr.bf16.mxu0 0
      %611 = vmatpush1.bf16.msra.mxu0 0
      %612 = vmatprep.subr.bf16.mxu0 0
      %613 = vmatpush1.bf16.msra.mxu0 0
      %614 = vmatprep.mubr.bf16.mxu0 0
      %615 = vmatmul.mubr.bf16.gmra.mrb[0].mxu0 %v293
      %v616 = vpop.f32.mrb[0].mxu0
      %v617 = vadd.f32 0.0, %v616
      %v618 = vpop.f32.mrb[0].mxu0
      %v619 = vadd.f32 0.0, %v618
      %v620 = vpop.f32.mrb[0].mxu0
      %v621 = vadd.f32 0.0, %v620
      %v622 = vpop.f32.mrb[0].mxu0
      %v623 = vadd.f32 0.0, %v622
      %624 = vmatprep.mubr.bf16.mxu0 0
      %625 = vmatmul.mubr.bf16.gmra.mrb[0].mxu0 %v294
      %v626 = vpop.f32.mrb[0].mxu0
      %v627 = vadd.f32 0.0, %v626
      %v628 = vpop.f32.mrb[0].mxu0
      %v629 = vadd.f32 0.0, %v628
      %v630 = vpop.f32.mrb[0].mxu0
      %v631 = vadd.f32 0.0, %v630
      %v632 = vpop.f32.mrb[0].mxu0
      %v633 = vadd.f32 0.0, %v632
      %634 = vmatprep.mubr.bf16.mxu0 0
      %635 = vmatmul.mubr.bf16.gmra.mrb[0].mxu0 %v295
      %v636 = vpop.f32.mrb[0].mxu0
      %v637 = vadd.f32 0.0, %v636
      %v638 = vpop.f32.mrb[0].mxu0
      %v639 = vadd.f32 0.0, %v638
      %v640 = vpop.f32.mrb[0].mxu0
      %v641 = vadd.f32 0.0, %v640
      %v642 = vpop.f32.mrb[0].mxu0
      %v643 = vadd.f32 0.0, %v642
      %644 = vmatprep.mubr.bf16.mxu0 0
      %645 = vmatmul.mubr.bf16.gmra.mrb[0].mxu0 %v296
      %v646 = vpop.f32.mrb[0].mxu0
      %v647 = vadd.f32 0.0, %v646
      %v648 = vpop.f32.mrb[0].mxu0
      %v649 = vadd.f32 0.0, %v648
      %v650 = vpop.f32.mrb[0].mxu0
      %v651 = vadd.f32 0.0, %v650
      %v652 = vpop.f32.mrb[0].mxu0
      %v653 = vadd.f32 0.0, %v652
      %654 = vdwg.mxu0
      %655 = vmatprep.subr.bf16.mxu0 0
      %656 = vmatpush1.bf16.msra.mxu0 %v433
      %657 = vmatprep.subr.bf16.mxu0 0
      %658 = vmatpush1.bf16.msra.mxu0 %v438
      %659 = vmatprep.subr.bf16.mxu0 0
      %660 = vmatpush1.bf16.msra.mxu0 %v443
      %661 = vmatprep.subr.bf16.mxu0 0
      %662 = vmatpush1.bf16.msra.mxu0 %v448
      %663 = vmatprep.subr.bf16.mxu0 0
      %664 = vmatpush1.bf16.msra.mxu0 %v453
      %665 = vmatprep.subr.bf16.mxu0 0
      %666 = vmatpush1.bf16.msra.mxu0 %v458
      %667 = vmatprep.subr.bf16.mxu0 0
      %668 = vmatpush1.bf16.msra.mxu0 %v463
      %669 = vmatprep.subr.bf16.mxu0 0
      %670 = vmatpush1.bf16.msra.mxu0 %v468
      %671 = vmatprep.subr.bf16.mxu0 0
      %672 = vmatpush1.bf16.msra.mxu0 0
      %673 = vmatprep.subr.bf16.mxu0 0
      %674 = vmatpush1.bf16.msra.mxu0 0
      %675 = vmatprep.subr.bf16.mxu0 0
      %676 = vmatpush1.bf16.msra.mxu0 0
      %677 = vmatprep.subr.bf16.mxu0 0
      %678 = vmatpush1.bf16.msra.mxu0 0
      %679 = vmatprep.subr.bf16.mxu0 0
      %680 = vmatpush1.bf16.msra.mxu0 0
      %681 = vmatprep.subr.bf16.mxu0 0
      %682 = vmatpush1.bf16.msra.mxu0 0
      %683 = vmatprep.subr.bf16.mxu0 0
      %684 = vmatpush1.bf16.msra.mxu0 0
      %685 = vmatprep.subr.bf16.mxu0 0
      %686 = vmatpush1.bf16.msra.mxu0 0
      %687 = vmatprep.mubr.bf16.mxu0 0
      %688 = vmatmul.mubr.bf16.gmra.mrb[0].mxu0 %v293
      %v689 = vpop.f32.mrb[0].mxu0
      %v690 = vadd.f32 0.0, %v689
      %v691 = vpop.f32.mrb[0].mxu0
      %v692 = vpop.f32.mrb[0].mxu0
      %v693 = vadd.f32 0.0, %v692
      %v694 = vpop.f32.mrb[0].mxu0
      %695 = vmatprep.mubr.bf16.mxu0 0
      %696 = vmatmul.mubr.bf16.gmra.mrb[0].mxu0 %v294
      %v697 = vpop.f32.mrb[0].mxu0
      %v698 = vadd.f32 0.0, %v697
      %v699 = vpop.f32.mrb[0].mxu0
      %v700 = vpop.f32.mrb[0].mxu0
      %v701 = vadd.f32 0.0, %v700
      %v702 = vpop.f32.mrb[0].mxu0
      %703 = vmatprep.mubr.bf16.mxu0 0
      %704 = vmatmul.mubr.bf16.gmra.mrb[0].mxu0 %v295
      %v705 = vpop.f32.mrb[0].mxu0
      %v706 = vadd.f32 0.0, %v705
      %v707 = vpop.f32.mrb[0].mxu0
      %v708 = vpop.f32.mrb[0].mxu0
      %v709 = vadd.f32 0.0, %v708
      %v710 = vpop.f32.mrb[0].mxu0
      %711 = vmatprep.mubr.bf16.mxu0 0
      %712 = vmatmul.mubr.bf16.gmra.mrb[0].mxu0 %v296
      %v713 = vpop.f32.mrb[0].mxu0
      %v714 = vadd.f32 0.0, %v713
      %v715 = vpop.f32.mrb[0].mxu0
      %v716 = vpop.f32.mrb[0].mxu0
      %v717 = vadd.f32 0.0, %v716
      %v718 = vpop.f32.mrb[0].mxu0
      %719 = vdwg.mxu0
      %v720 = vlaneseq
      %v721 = vand.u32 %v720, 127
      %vm722 = vcmp.lt.s32.totalorder %v721, 4
      %v723 = vsel %vm722, %v544, -1e+30
      %v724 = vsel %vm722, %v548, -1e+30
      %v725 = vsel %vm722, %v554, -1e+30
      %v726 = vsel %vm722, %v558, -1e+30
      %v727 = vsel %vm722, %v564, -1e+30
      %v728 = vsel %vm722, %v568, -1e+30
      %v729 = vsel %vm722, %v574, -1e+30
      %v730 = vsel %vm722, %v578, -1e+30
      %731 = vmax.xlane.f32.xlu0 %v723
      %v732 = vpop.xlane.xlu0 %731
      %733 = vmax.xlane.f32.xlu0 %v724
      %v734 = vpop.xlane.xlu0 %733
      %735 = vmax.xlane.f32.xlu0 %v725
      %v736 = vpop.xlane.xlu0 %735
      %737 = vmax.xlane.f32.xlu0 %v726
      %v738 = vpop.xlane.xlu0 %737
      %739 = vmax.xlane.f32.xlu0 %v727
      %v740 = vpop.xlane.xlu0 %739
      %741 = vmax.xlane.f32.xlu0 %v728
      %v742 = vpop.xlane.xlu0 %741
      %743 = vmax.xlane.f32.xlu0 %v729
      %v744 = vpop.xlane.xlu0 %743
      %745 = vmax.xlane.f32.xlu0 %v730
      %v746 = vpop.xlane.xlu0 %745
      %v747 = vsub.f32 %v723, %v732
      %v748 = vsub.f32 %v724, %v734
      %v749 = vsub.f32 %v725, %v736
      %v750 = vsub.f32 %v726, %v738
      %v751 = vsub.f32 %v727, %v740
      %v752 = vsub.f32 %v728, %v742
      %v753 = vsub.f32 %v729, %v744
      %v754 = vsub.f32 %v730, %v746
      %v755 = vmul.f32 %v747, 1.442695
      %v756 = vpow.pop %v755
      %v757 = vmul.f32 %v748, 1.442695
      %v758 = vpow.pop %v757
      %v759 = vmul.f32 %v749, 1.442695
      %v760 = vpow.pop %v759
      %v761 = vmul.f32 %v750, 1.442695
      %v762 = vpow.pop %v761
      %v763 = vmul.f32 %v751, 1.442695
      %v764 = vpow.pop %v763
      %v765 = vmul.f32 %v752, 1.442695
      %v766 = vpow.pop %v765
      %v767 = vmul.f32 %v753, 1.442695
      %v768 = vpow.pop %v767
      %v769 = vmul.f32 %v754, 1.442695
      %v770 = vpow.pop %v769
      %v771 = vsel %vm722, %v756, 0.0
      %v772 = vsel %vm722, %v758, 0.0
      %v773 = vsel %vm722, %v760, 0.0
      %v774 = vsel %vm722, %v762, 0.0
      %v775 = vsel %vm722, %v764, 0.0
      %v776 = vsel %vm722, %v766, 0.0
      %v777 = vsel %vm722, %v768, 0.0
      %v778 = vsel %vm722, %v770, 0.0
      %779 = vadd.xlane.f32.xlu0 %v771
      %v780 = vpop.xlane.xlu0 %779
      %781 = vadd.xlane.f32.xlu0 %v772
      %v782 = vpop.xlane.xlu0 %781
      %783 = vadd.xlane.f32.xlu0 %v773
      %v784 = vpop.xlane.xlu0 %783
      %785 = vadd.xlane.f32.xlu0 %v774
      %v786 = vpop.xlane.xlu0 %785
      %787 = vadd.xlane.f32.xlu0 %v775
      %v788 = vpop.xlane.xlu0 %787
      %789 = vadd.xlane.f32.xlu0 %v776
      %v790 = vpop.xlane.xlu0 %789
      %791 = vadd.xlane.f32.xlu0 %v777
      %v792 = vpop.xlane.xlu0 %791
      %793 = vadd.xlane.f32.xlu0 %v778
      %v794 = vpop.xlane.xlu0 %793
      %v795 = vrcp.pop %v780
      %v796 = vrcp.pop %v782
      %v797 = vrcp.pop %v784
      %v798 = vrcp.pop %v786
      %v799 = vrcp.pop %v788
      %v800 = vrcp.pop %v790
      %v801 = vrcp.pop %v792
      %v802 = vrcp.pop %v794
      %v803 = vmul.f32 %v771, %v795
      %v804 = vmul.f32 %v772, %v796
      %v805 = vmul.f32 %v773, %v797
      %v806 = vmul.f32 %v774, %v798
      %v807 = vmul.f32 %v775, %v799
      %v808 = vmul.f32 %v776, %v800
      %v809 = vmul.f32 %v777, %v801
      %v810 = vmul.f32 %v778, %v802
      %v811 = vld [vmem:[%s214] sm:$0xff]
      %v812 = vld [vmem:[%s214 + $0x8] sm:$0xff]
      %v813 = vld [vmem:[%s214 + $0x10] sm:$0xff]
      %v814 = vld [vmem:[%s214 + $0x18] sm:$0xff]
      %v815 = vld [vmem:[%s214 + $0x20] sm:$0xff]
      %v816 = vld [vmem:[%s214 + $0x28] sm:$0xff]
      %v817 = vld [vmem:[%s214 + $0x30] sm:$0xff]
      %v818 = vld [vmem:[%s214 + $0x38] sm:$0xff]
      %820 = vset.pattern.permute.xlu0 0
      %821 = vperm.xlu0 %820, %v811
      %v822 = vpop.permute.xlu0 %821
      %825 = vset.pattern.permute.xlu0 0
      %826 = vperm.xlu0 %825, %v812
      %v827 = vpop.permute.xlu0 %826
      %830 = vset.pattern.permute.xlu0 0
      %831 = vperm.xlu0 %830, %v813
      %v832 = vpop.permute.xlu0 %831
      %835 = vset.pattern.permute.xlu0 0
      %836 = vperm.xlu0 %835, %v814
      %v837 = vpop.permute.xlu0 %836
      %840 = vset.pattern.permute.xlu0 0
      %841 = vperm.xlu0 %840, %v815
      %v842 = vpop.permute.xlu0 %841
      %845 = vset.pattern.permute.xlu0 0
      %846 = vperm.xlu0 %845, %v816
      %v847 = vpop.permute.xlu0 %846
      %850 = vset.pattern.permute.xlu0 0
      %851 = vperm.xlu0 %850, %v817
      %v852 = vpop.permute.xlu0 %851
      %855 = vset.pattern.permute.xlu0 0
      %856 = vperm.xlu0 %855, %v818
      %v857 = vpop.permute.xlu0 %856
      %v859 = vmul.f32 %v803, %v822
      %v860 = vmul.f32 %v804, %v827
      %v861 = vmul.f32 %v805, %v832
      %v862 = vmul.f32 %v806, %v837
      %v863 = vmul.f32 %v807, %v842
      %v864 = vmul.f32 %v808, %v847
      %v865 = vmul.f32 %v809, %v852
      %v866 = vmul.f32 %v810, %v857
      %868 = vset.pattern.permute.xlu0 0
      %869 = vperm.xlu0 %868, %v859
      %v870 = vpop.permute.xlu0 %869
      %873 = vset.pattern.permute.xlu0 0
      %874 = vperm.xlu0 %873, %v860
      %v875 = vpop.permute.xlu0 %874
      %878 = vset.pattern.permute.xlu0 0
      %879 = vperm.xlu0 %878, %v861
      %v880 = vpop.permute.xlu0 %879
      %883 = vset.pattern.permute.xlu0 0
      %884 = vperm.xlu0 %883, %v862
      %v885 = vpop.permute.xlu0 %884
      %888 = vset.pattern.permute.xlu0 0
      %889 = vperm.xlu0 %888, %v863
      %v890 = vpop.permute.xlu0 %889
      %893 = vset.pattern.permute.xlu0 0
      %894 = vperm.xlu0 %893, %v864
      %v895 = vpop.permute.xlu0 %894
      %898 = vset.pattern.permute.xlu0 0
      %899 = vperm.xlu0 %898, %v865
      %v900 = vpop.permute.xlu0 %899
      %903 = vset.pattern.permute.xlu0 0
      %904 = vperm.xlu0 %903, %v866
      %v905 = vpop.permute.xlu0 %904
      %v907 = vmul.f32 %v870, %v546
      %v908 = vmul.f32 %v875, %v550
      %v909 = vmul.f32 %v880, %v556
      %v910 = vmul.f32 %v885, %v560
      %v911 = vmul.f32 %v890, %v566
      %v912 = vmul.f32 %v895, %v570
      %v913 = vmul.f32 %v900, %v576
      %v914 = vmul.f32 %v905, %v580
      %v915 = vadd.f32 %v907, 0.0
      %v916 = vadd.f32 %v908, 0.0
      %v917 = vadd.f32 %v909, 0.0
      %v918 = vadd.f32 %v910, 0.0
      %v919 = vadd.f32 %v911, 0.0
      %v920 = vadd.f32 %v912, 0.0
      %v921 = vadd.f32 %v913, 0.0
      %v922 = vadd.f32 %v914, 0.0
      %923 = vset.pattern.permute.xlu0 1
      %924 = vperm.xlu0 %923, %v859
      %v925 = vpop.permute.xlu0 %924
      %927 = vset.pattern.permute.xlu0 1
      %928 = vperm.xlu0 %927, %v860
      %v929 = vpop.permute.xlu0 %928
      %931 = vset.pattern.permute.xlu0 1
      %932 = vperm.xlu0 %931, %v861
      %v933 = vpop.permute.xlu0 %932
      %935 = vset.pattern.permute.xlu0 1
      %936 = vperm.xlu0 %935, %v862
      %v937 = vpop.permute.xlu0 %936
      %939 = vset.pattern.permute.xlu0 1
      %940 = vperm.xlu0 %939, %v863
      %v941 = vpop.permute.xlu0 %940
      %943 = vset.pattern.permute.xlu0 1
      %944 = vperm.xlu0 %943, %v864
      %v945 = vpop.permute.xlu0 %944
      %947 = vset.pattern.permute.xlu0 1
      %948 = vperm.xlu0 %947, %v865
      %v949 = vpop.permute.xlu0 %948
      %951 = vset.pattern.permute.xlu0 1
      %952 = vperm.xlu0 %951, %v866
      %v953 = vpop.permute.xlu0 %952
      %v955 = vmul.f32 %v925, %v617
      %v956 = vmul.f32 %v929, %v621
      %v957 = vmul.f32 %v933, %v627
      %v958 = vmul.f32 %v937, %v631
      %v959 = vmul.f32 %v941, %v637
      %v960 = vmul.f32 %v945, %v641
      %v961 = vmul.f32 %v949, %v647
      %v962 = vmul.f32 %v953, %v651
      %v963 = vadd.f32 %v915, %v955
      %v964 = vadd.f32 %v916, %v956
      %v965 = vadd.f32 %v917, %v957
      %v966 = vadd.f32 %v918, %v958
      %v967 = vadd.f32 %v919, %v959
      %v968 = vadd.f32 %v920, %v960
      %v969 = vadd.f32 %v921, %v961
      %v970 = vadd.f32 %v922, %v962
      %971 = vset.pattern.permute.xlu0 2
      %972 = vperm.xlu0 %971, %v859
      %v973 = vpop.permute.xlu0 %972
      %975 = vset.pattern.permute.xlu0 2
      %976 = vperm.xlu0 %975, %v860
      %v977 = vpop.permute.xlu0 %976
      %979 = vset.pattern.permute.xlu0 2
      %980 = vperm.xlu0 %979, %v861
      %v981 = vpop.permute.xlu0 %980
      %983 = vset.pattern.permute.xlu0 2
      %984 = vperm.xlu0 %983, %v862
      %v985 = vpop.permute.xlu0 %984
      %987 = vset.pattern.permute.xlu0 2
      %988 = vperm.xlu0 %987, %v863
      %v989 = vpop.permute.xlu0 %988
      %991 = vset.pattern.permute.xlu0 2
      %992 = vperm.xlu0 %991, %v864
      %v993 = vpop.permute.xlu0 %992
      %995 = vset.pattern.permute.xlu0 2
      %996 = vperm.xlu0 %995, %v865
      %v997 = vpop.permute.xlu0 %996
      %999 = vset.pattern.permute.xlu0 2
      %1000 = vperm.xlu0 %999, %v866
      %v1001 = vpop.permute.xlu0 %1000
      %v1003 = vmul.f32 %v973, %v619
      %v1004 = vmul.f32 %v977, %v623
      %v1005 = vmul.f32 %v981, %v629
      %v1006 = vmul.f32 %v985, %v633
      %v1007 = vmul.f32 %v989, %v639
      %v1008 = vmul.f32 %v993, %v643
      %v1009 = vmul.f32 %v997, %v649
      %v1010 = vmul.f32 %v1001, %v653
      %v1011 = vadd.f32 %v963, %v1003
      %v1012 = vadd.f32 %v964, %v1004
      %v1013 = vadd.f32 %v965, %v1005
      %v1014 = vadd.f32 %v966, %v1006
      %v1015 = vadd.f32 %v967, %v1007
      %v1016 = vadd.f32 %v968, %v1008
      %v1017 = vadd.f32 %v969, %v1009
      %v1018 = vadd.f32 %v970, %v1010
      %1019 = vset.pattern.permute.xlu0 3
      %1020 = vperm.xlu0 %1019, %v859
      %v1021 = vpop.permute.xlu0 %1020
      %1023 = vset.pattern.permute.xlu0 3
      %1024 = vperm.xlu0 %1023, %v860
      %v1025 = vpop.permute.xlu0 %1024
      %1027 = vset.pattern.permute.xlu0 3
      %1028 = vperm.xlu0 %1027, %v861
      %v1029 = vpop.permute.xlu0 %1028
      %1031 = vset.pattern.permute.xlu0 3
      %1032 = vperm.xlu0 %1031, %v862
      %v1033 = vpop.permute.xlu0 %1032
      %1035 = vset.pattern.permute.xlu0 3
      %1036 = vperm.xlu0 %1035, %v863
      %v1037 = vpop.permute.xlu0 %1036
      %1039 = vset.pattern.permute.xlu0 3
      %1040 = vperm.xlu0 %1039, %v864
      %v1041 = vpop.permute.xlu0 %1040
      %1043 = vset.pattern.permute.xlu0 3
      %1044 = vperm.xlu0 %1043, %v865
      %v1045 = vpop.permute.xlu0 %1044
      %1047 = vset.pattern.permute.xlu0 3
      %1048 = vperm.xlu0 %1047, %v866
      %v1049 = vpop.permute.xlu0 %1048
      %v1051 = vmul.f32 %v1021, %v690
      %v1052 = vmul.f32 %v1025, %v693
      %v1053 = vmul.f32 %v1029, %v698
      %v1054 = vmul.f32 %v1033, %v701
      %v1055 = vmul.f32 %v1037, %v706
      %v1056 = vmul.f32 %v1041, %v709
      %v1057 = vmul.f32 %v1045, %v714
      %v1058 = vmul.f32 %v1049, %v717
      %v1059 = vadd.f32 %v1011, %v1051
      %v1060 = vadd.f32 %v1012, %v1052
      %v1061 = vadd.f32 %v1013, %v1053
      %v1062 = vadd.f32 %v1014, %v1054
      %v1063 = vadd.f32 %v1015, %v1055
      %v1064 = vadd.f32 %v1016, %v1056
      %v1065 = vadd.f32 %v1017, %v1057
      %v1066 = vadd.f32 %v1018, %v1058
      %v1067 = vld [vmem:[%s3] sm:$0xff]
      %v1068 = vld [vmem:[%s3 + $0x8] sm:$0xff]
      %v1069 = vld [vmem:[%s3 + $0x10] sm:$0xff]
      %v1070 = vld [vmem:[%s3 + $0x18] sm:$0xff]
      %v1071 = vld [vmem:[%s3 + $0x20] sm:$0xff]
      %v1072 = vld [vmem:[%s3 + $0x28] sm:$0xff]
      %v1073 = vld [vmem:[%s3 + $0x30] sm:$0xff]
      %v1074 = vld [vmem:[%s3 + $0x38] sm:$0xff]
      %v1075 = vld [vmem:[%s3 + $0x40] sm:$0xff]
      %v1076 = vld [vmem:[%s3 + $0x48] sm:$0xff]
      %v1077 = vld [vmem:[%s3 + $0x50] sm:$0xff]
      %v1078 = vld [vmem:[%s3 + $0x58] sm:$0xff]
      %v1079 = vld [vmem:[%s3 + $0x60] sm:$0xff]
      %v1080 = vld [vmem:[%s3 + $0x68] sm:$0xff]
      %v1081 = vld [vmem:[%s3 + $0x70] sm:$0xff]
      %v1082 = vld [vmem:[%s3 + $0x78] sm:$0xff]
      %1083 = vmatprep.subr.mxu0 0.0
      %1084 = vmatpush1.msra.mxu0 %v1067
      %1085 = vmatprep.subr.mxu0 0.0
      %1086 = vmatpush1.msra.mxu0 %v1068
      %1087 = vmatprep.subr.mxu0 0.0
      %1088 = vmatpush1.msra.mxu0 %v1069
      %1089 = vmatprep.subr.mxu0 0.0
      %1090 = vmatpush1.msra.mxu0 %v1070
      %1091 = vmatprep.subr.mxu0 0.0
      %1092 = vmatpush1.msra.mxu0 %v1071
      %1093 = vmatprep.subr.mxu0 0.0
      %1094 = vmatpush1.msra.mxu0 %v1072
      %1095 = vmatprep.subr.mxu0 0.0
      %1096 = vmatpush1.msra.mxu0 %v1073
      %1097 = vmatprep.subr.mxu0 0.0
      %1098 = vmatpush1.msra.mxu0 %v1074
      %1099 = vmatprep.subr.mxu0 0.0
      %1100 = vmatpush1.msra.mxu0 %v1075
      %1101 = vmatprep.subr.mxu0 0.0
      %1102 = vmatpush1.msra.mxu0 %v1076
      %1103 = vmatprep.subr.mxu0 0.0
      %1104 = vmatpush1.msra.mxu0 %v1077
      %1105 = vmatprep.subr.mxu0 0.0
      %1106 = vmatpush1.msra.mxu0 %v1078
      %1107 = vmatprep.subr.mxu0 0.0
      %1108 = vmatpush1.msra.mxu0 %v1079
      %1109 = vmatprep.subr.mxu0 0.0
      %1110 = vmatpush1.msra.mxu0 %v1080
      %1111 = vmatprep.subr.mxu0 0.0
      %1112 = vmatpush1.msra.mxu0 %v1081
      %1113 = vmatprep.subr.mxu0 0.0
      %1114 = vmatpush1.msra.mxu0 %v1082
      %1115 = vmatprep.subr.mxu0 0.0
      %1116 = vmatpush1.msra.mxu0 0.0
      %1117 = vmatprep.subr.mxu0 0.0
      %1118 = vmatpush1.msra.mxu0 0.0
      %1119 = vmatprep.subr.mxu0 0.0
      %1120 = vmatpush1.msra.mxu0 0.0
      %1121 = vmatprep.subr.mxu0 0.0
      %1122 = vmatpush1.msra.mxu0 0.0
      %1123 = vmatprep.subr.mxu0 0.0
      %1124 = vmatpush1.msra.mxu0 0.0
      %1125 = vmatprep.subr.mxu0 0.0
      %1126 = vmatpush1.msra.mxu0 0.0
      %1127 = vmatprep.subr.mxu0 0.0
      %1128 = vmatpush1.msra.mxu0 0.0
      %1129 = vmatprep.subr.mxu0 0.0
      %1130 = vmatpush1.msra.mxu0 0.0
      %1131 = vmatprep.subr.mxu0 0.0
      %1132 = vmatpush1.msra.mxu0 0.0
      %1133 = vmatprep.subr.mxu0 0.0
      %1134 = vmatpush1.msra.mxu0 0.0
      %1135 = vmatprep.subr.mxu0 0.0
      %1136 = vmatpush1.msra.mxu0 0.0
      %1137 = vmatprep.subr.mxu0 0.0
      %1138 = vmatpush1.msra.mxu0 0.0
      %1139 = vmatprep.subr.mxu0 0.0
      %1140 = vmatpush1.msra.mxu0 0.0
      %1141 = vmatprep.subr.mxu0 0.0
      %1142 = vmatpush1.msra.mxu0 0.0
      %1143 = vmatprep.subr.mxu0 0.0
      %1144 = vmatpush1.msra.mxu0 0.0
      %1145 = vmatprep.subr.mxu0 0.0
      %1146 = vmatpush1.msra.mxu0 0.0
      %1147 = vmatprep.mubr.f32.mxu0 0.0
      %1148 = vmatmul.mubr.f32.gmra.mrb[0].mxu0 %v859
      %v1149 = vpop.f32.mrb[0].mxu0
      %v1150 = vadd.f32 0.0, %v1149
      %v1151 = vpop.f32.mrb[0].mxu0
      %1152 = vmatprep.mubr.f32.mxu0 0.0
      %1153 = vmatmul.mubr.f32.gmra.mrb[0].mxu0 %v860
      %v1154 = vpop.f32.mrb[0].mxu0
      %v1155 = vadd.f32 0.0, %v1154
      %v1156 = vpop.f32.mrb[0].mxu0
      %1157 = vmatprep.mubr.f32.mxu0 0.0
      %1158 = vmatmul.mubr.f32.gmra.mrb[0].mxu0 %v861
      %v1159 = vpop.f32.mrb[0].mxu0
      %v1160 = vadd.f32 0.0, %v1159
      %v1161 = vpop.f32.mrb[0].mxu0
      %1162 = vmatprep.mubr.f32.mxu0 0.0
      %1163 = vmatmul.mubr.f32.gmra.mrb[0].mxu0 %v862
      %v1164 = vpop.f32.mrb[0].mxu0
      %v1165 = vadd.f32 0.0, %v1164
      %v1166 = vpop.f32.mrb[0].mxu0
      %1167 = vmatprep.mubr.f32.mxu0 0.0
      %1168 = vmatmul.mubr.f32.gmra.mrb[0].mxu0 %v863
      %v1169 = vpop.f32.mrb[0].mxu0
      %v1170 = vadd.f32 0.0, %v1169
      %v1171 = vpop.f32.mrb[0].mxu0
      %1172 = vmatprep.mubr.f32.mxu0 0.0
      %1173 = vmatmul.mubr.f32.gmra.mrb[0].mxu0 %v864
      %v1174 = vpop.f32.mrb[0].mxu0
      %v1175 = vadd.f32 0.0, %v1174
      %v1176 = vpop.f32.mrb[0].mxu0
      %1177 = vmatprep.mubr.f32.mxu0 0.0
      %1178 = vmatmul.mubr.f32.gmra.mrb[0].mxu0 %v865
      %v1179 = vpop.f32.mrb[0].mxu0
      %v1180 = vadd.f32 0.0, %v1179
      %v1181 = vpop.f32.mrb[0].mxu0
      %1182 = vmatprep.mubr.f32.mxu0 0.0
      %1183 = vmatmul.mubr.f32.gmra.mrb[0].mxu0 %v866
      %v1184 = vpop.f32.mrb[0].mxu0
      %v1185 = vadd.f32 0.0, %v1184
      %v1186 = vpop.f32.mrb[0].mxu0
      %1187 = vdwg.mxu0
      %v1188 = vsub.f32 %v1059, %v1150
      %v1189 = vsub.f32 %v1060, %v1155
      %v1190 = vsub.f32 %v1061, %v1160
      %v1191 = vsub.f32 %v1062, %v1165
      %v1192 = vsub.f32 %v1063, %v1170
      %v1193 = vsub.f32 %v1064, %v1175
      %v1194 = vsub.f32 %v1065, %v1180
      %v1195 = vsub.f32 %v1066, %v1185
      %v1196 = vrot.slane %v1188, 4
      %v1197 = vadd.f32 %v1188, %v1196
      %v1198 = vrot.slane %v1197, 2
      %v1199 = vadd.f32 %v1197, %v1198
      %v1200 = vrot.slane %v1199, 1
      %v1201 = vadd.f32 %v1199, %v1200
      %v1202 = vrot.slane %v1189, 4
      %v1203 = vadd.f32 %v1189, %v1202
      %v1204 = vrot.slane %v1203, 2
      %v1205 = vadd.f32 %v1203, %v1204
      %v1206 = vrot.slane %v1205, 1
      %v1207 = vadd.f32 %v1205, %v1206
      %v1208 = vrot.slane %v1190, 4
      %v1209 = vadd.f32 %v1190, %v1208
      %v1210 = vrot.slane %v1209, 2
      %v1211 = vadd.f32 %v1209, %v1210
      %v1212 = vrot.slane %v1211, 1
      %v1213 = vadd.f32 %v1211, %v1212
      %v1214 = vrot.slane %v1191, 4
      %v1215 = vadd.f32 %v1191, %v1214
      %v1216 = vrot.slane %v1215, 2
      %v1217 = vadd.f32 %v1215, %v1216
      %v1218 = vrot.slane %v1217, 1
      %v1219 = vadd.f32 %v1217, %v1218
      %v1220 = vrot.slane %v1192, 4
      %v1221 = vadd.f32 %v1192, %v1220
      %v1222 = vrot.slane %v1221, 2
      %v1223 = vadd.f32 %v1221, %v1222
      %v1224 = vrot.slane %v1223, 1
      %v1225 = vadd.f32 %v1223, %v1224
      %v1226 = vrot.slane %v1193, 4
      %v1227 = vadd.f32 %v1193, %v1226
      %v1228 = vrot.slane %v1227, 2
      %v1229 = vadd.f32 %v1227, %v1228
      %v1230 = vrot.slane %v1229, 1
      %v1231 = vadd.f32 %v1229, %v1230
      %v1232 = vrot.slane %v1194, 4
      %v1233 = vadd.f32 %v1194, %v1232
      %v1234 = vrot.slane %v1233, 2
      %v1235 = vadd.f32 %v1233, %v1234
      %v1236 = vrot.slane %v1235, 1
      %v1237 = vadd.f32 %v1235, %v1236
      %v1238 = vrot.slane %v1195, 4
      %v1239 = vadd.f32 %v1195, %v1238
      %v1240 = vrot.slane %v1239, 2
      %v1241 = vadd.f32 %v1239, %v1240
      %v1242 = vrot.slane %v1241, 1
      %v1243 = vadd.f32 %v1241, %v1242
      %vm1252 = vcmask 1041409
      %v1253 = vsel %vm1252, %v1207, %v1201
      %vm1254 = vcmask 1042434
      %v1255 = vsel %vm1254, %v1213, %v1253
      %vm1256 = vcmask 1043459
      %v1257 = vsel %vm1256, %v1219, %v1255
      %vm1258 = vcmask 1044484
      %v1259 = vsel %vm1258, %v1225, %v1257
      %vm1260 = vcmask 1045509
      %v1261 = vsel %vm1260, %v1231, %v1259
      %vm1262 = vcmask 1046534
      %v1263 = vsel %vm1262, %v1237, %v1261
      %vm1264 = vcmask 1047559
      %v1265 = vsel %vm1264, %v1243, %v1263
      %1267 = vst [vmem:[%s219] sm:$0xff] %v1265
      %p1268 = scmp.lt.s32.totalorder %s15, 1
      %s1269 = scalar_select %p1268, %s15, 1
      %s1270 = smul.addr %s1269, 8
      %s1271 = scalar_lea.vmem %s4, %s1270
      // Predicated region
      $region37: #{moe_forward.2} parent=35 // pred_check
        %p1272 = pneg %p127
      $region38: #{moe_forward.2} parent=35 // pred_check_branch
        %1274 = sbr.rel (%p1272) target = $region40
      $region39: #{moe_forward.2} parent=35 // pred_region
        _
      $region40: #{moe_forward.2} parent=35 // pred_fallthru
        _
    $region36: #{moe_forward.2} parent=5 // pred_fallthru
      _
    %p1275 = scmp.le.s32.totalorder 2, %s10
    // Predicated region
    $region41: #{moe_forward.2} parent=5 // pred_check
      %p1276 = pneg %p1275
    $region42: #{moe_forward.2} parent=5 // pred_check_branch
      %1278 = sbr.rel (%p1276) target = $region44
    $region43: #{moe_forward.2} parent=5 // pred_region
      %s1279 = ssub.s32 %s10, 2
      // Predicated region
      $region45: #{moe_forward.2} parent=43 // pred_check
        %p1280 = pneg %p133
      $region46: #{moe_forward.2} parent=43 // pred_check_branch
        %1282 = sbr.rel (%p1280) target = $region48
      $region47: #{moe_forward.2} parent=43 // pred_region
        %p1283 = scmp.lt.s32.totalorder %s16, 1
        %s1284 = scalar_select %p1283, %s16, 1
        %s1285 = smul.addr %s1284, 8
        %s1286 = scalar_lea.vmem %s4, %s1285
      $region48: #{moe_forward.2} parent=43 // pred_fallthru
        _
    $region44: #{moe_forward.2} parent=5 // pred_fallthru
      _
  $region6: #{moe_forward.2} parent=0 // loop_footer
    %s14 = sadd.s32 1, %s10
  $region7: #{moe_forward.2} parent=0 // loop_footer_branch
    %9 = sbr.rel target = $region3
  $region8: #{moe_forward.2} parent=0 // loop_exit
    _

</llo_original>
